<compile_context>
chip_gen: v7x
topology: tpu7x:2x2x1
jax: 0.10.0
libtpu: 0.0.40
codegen_flags: <defaults>
</compile_context>

<pallas_src>
import jax
import jax.numpy as jnp
from jax.experimental import pallas as pl
from jax.experimental.pallas import tpu as pltpu

# Problem sizes consistent with Conv2d(1, 4, 3) on a small NCHW input.
N, CIN, H, W = 2, 1, 16, 16
COUT, KH, KW = 4, 3, 3
OH, OW = H - KH + 1, W - KW + 1
EPS = 1e-5           # torch.nn.BatchNorm2d default eps
LANES = 128          # lane-dense output width per instance


def conv_bn_relu_sum_kernel(x_ref, w_ref, gamma_ref, beta_ref, out_ref):
    # x_ref:     (N, H, W) f32 VMEM  (one instance; C_in squeezed by BlockSpec)
    # w_ref:     (COUT*KH*KW,) f32 SMEM flat conv weights (bias omitted: it
    #            cancels exactly under BN batch-mean subtraction)
    # gamma_ref, beta_ref: (COUT,) f32 SMEM
    # out_ref:   (1, 8, LANES) f32 VMEM -- instance scalar, lane-dense store
    x = x_ref[...].astype(jnp.float32)

    # ---- Conv2d(1 -> COUT, 3x3, stride 1, valid): tap-major VPU loop.
    # Each shifted slice is built inside the loop and consumed by the COUT
    # scalar-broadcast FMAs before the next tap is formed.
    accs = [None] * COUT
    for t in range(KH * KW):
        ki, kj = divmod(t, KW)
        tap = x[:, ki:ki + OH, kj:kj + OW]                      # (N, OH, OW)
        for co in range(COUT):
            contrib = w_ref[co * (KH * KW) + t] * tap
            accs[co] = contrib if accs[co] is None else accs[co] + contrib

    # ---- BatchNorm2d training-mode stats (biased variance), fused first-stage
    # reduction: one lane-axis reduce over every channel's acc and acc*acc
    # (concatenated along the untiled leading axis -> no relayout).
    cat = jnp.concatenate(accs + [a * a for a in accs], axis=0)  # (2*COUT*N, OH, OW)
    part = jnp.sum(cat, axis=-1, keepdims=True)                  # (2*COUT*N, OH, 1)

    inv_count = 1.0 / float(N * OH * OW)
    relu_acc = None
    for co in range(COUT):
        s1 = jnp.sum(part[co * N:(co + 1) * N])                  # tiny finish
        s2 = jnp.sum(part[(COUT + co) * N:(COUT + co + 1) * N])
        mean = s1 * inv_count
        # E[x^2]-mean^2 is fine at unit scale (bias removed); use Welford/2-pass
        # if input scale ever grows.
        var = s2 * inv_count - mean * mean
        scale = jax.lax.rsqrt(var + EPS) * gamma_ref[co]
        shift = beta_ref[co] - mean * scale
        y = jnp.maximum(accs[co] * scale + shift, 0.0)
        relu_acc = y if relu_acc is None else relu_acc + y

    total = jnp.sum(relu_acc)                                    # single global reduce
    out_ref[...] = total + jnp.zeros((1, 8, LANES), jnp.float32)  # lane-dense store


def _param_specs():
    smem = pltpu.MemorySpace.SMEM
    return [pl.BlockSpec(memory_space=smem),   # conv weights (flat)
            pl.BlockSpec(memory_space=smem),   # bn gamma
            pl.BlockSpec(memory_space=smem)]   # bn beta


def _cost(num_instances):
    flops = num_instances * (2 * N * OH * OW * COUT * KH * KW      # conv MACs
                             + 6 * N * OH * OW * COUT)             # BN + ReLU + sums
    bytes_accessed = (num_instances * (N * H * W + 8 * LANES)
                      + COUT * KH * KW + 2 * COUT) * 4
    return pl.CostEstimate(flops=flops,
                           transcendentals=num_instances * COUT,
                           bytes_accessed=bytes_accessed)


def prepare_params(w, gamma, beta):
    """One-time (module-init style) parameter prep; not on the per-call path."""
    return (w.reshape(-1).astype(jnp.float32),      # (COUT*KH*KW,)
            gamma.astype(jnp.float32),              # (COUT,)
            beta.astype(jnp.float32))               # (COUT,)


@jax.jit
def model_forward(x, w_flat, gamma, beta):
    """Module-equivalent forward: x is (N, 1, H, W) NCHW -> scalar sum."""
    out = pl.pallas_call(
        conv_bn_relu_sum_kernel,
        out_shape=jax.ShapeDtypeStruct((1, 8, LANES), jnp.float32),
        grid=(1,),
        in_specs=[pl.BlockSpec((N, None, H, W), lambda i: (0, 0, 0, 0))]
                 + _param_specs(),
        out_specs=pl.BlockSpec((1, 8, LANES), lambda i: (0, 0, 0)),
        compiler_params=pltpu.CompilerParams(dimension_semantics=("arbitrary",)),
        cost_estimate=_cost(1),
    )(x, w_flat, gamma, beta)
    return out[0, 0, 0]


@jax.jit
def model_forward_batched(xb, w_flat, gamma, beta):
    """Throughput path: xb is (B, N, 1, H, W) -- B independent instances per
    pallas_call, one grid step each, parallel semantics (splits across the two
    TensorCores on v7x)."""
    B = xb.shape[0]
    out = pl.pallas_call(
        conv_bn_relu_sum_kernel,
        out_shape=jax.ShapeDtypeStruct((B, 8, LANES), jnp.float32),
        grid=(B,),
        in_specs=[pl.BlockSpec((None, N, None, H, W),
                               lambda i: (i, 0, 0, 0, 0))] + _param_specs(),
        out_specs=pl.BlockSpec((1, 8, LANES), lambda i: (i, 0, 0)),
        compiler_params=pltpu.CompilerParams(dimension_semantics=("parallel",)),
        cost_estimate=_cost(B),
    )(xb, w_flat, gamma, beta)
    return out[:, 0, 0]


def reference_forward(x, w, b, gamma, beta):
    # Pure-JAX reference matching the PyTorch module (conv bias INCLUDED;
    # training-mode BN with biased batch variance).
    y = jax.lax.conv_general_dilated(
        x, w, window_strides=(1, 1), padding="VALID",
        dimension_numbers=("NCHW", "OIHW", "NCHW"))
    y = y + b[None, :, None, None]
    mean = jnp.mean(y, axis=(0, 2, 3), keepdims=True)
    var = jnp.mean((y - mean) ** 2, axis=(0, 2, 3), keepdims=True)
    y = (y - mean) * jax.lax.rsqrt(var + EPS)
    y = y * gamma[None, :, None, None] + beta[None, :, None, None]
    return jnp.sum(jnp.maximum(y, 0.0))


if __name__ == "__main__":
    key = jax.random.PRNGKey(0)
    kx, kw, kb, kg, kbe, kxb = jax.random.split(key, 6)

    x = jax.random.normal(kx, (N, CIN, H, W), dtype=jnp.float32)
    fan_in = CIN * KH * KW
    bound = 1.0 / (fan_in ** 0.5)
    w = jax.random.uniform(kw, (COUT, CIN, KH, KW), jnp.float32, -bound, bound)
    b = jax.random.uniform(kb, (COUT,), jnp.float32, -bound, bound)
    gamma = 1.0 + 0.1 * jax.random.normal(kg, (COUT,), jnp.float32)
    beta = 0.1 * jax.random.normal(kbe, (COUT,), jnp.float32)

    w_flat, gamma_p, beta_p = prepare_params(w, gamma, beta)

    # Module-equivalent single forward (reference keeps the conv bias; the
    # kernel drops it -- exact cancellation under batch-mean subtraction).
    out = model_forward(x, w_flat, gamma_p, beta_p)
    jax.block_until_ready(out)
    ref = reference_forward(x, w, b, gamma, beta)
    assert jnp.allclose(out, ref, rtol=5e-4, atol=5e-4), (out, ref)

    # Batched throughput path: 4 independent instances in one pallas_call.
    B = 4
    xb = jax.random.normal(kxb, (B, N, CIN, H, W), dtype=jnp.float32)
    outs = model_forward_batched(xb, w_flat, gamma_p, beta_p)
    jax.block_until_ready(outs)
    refs = jax.vmap(lambda xi: reference_forward(xi, w, b, gamma, beta))(xb)
    assert jnp.allclose(outs, refs, rtol=5e-4, atol=5e-4), (outs, refs)

    print("KERNEL_OK")
</pallas_src>

<mosaic_0001>
module attributes {stable_mosaic.version = 11 : i64} {
  func.func @conv_bn_relu_sum_kernel(%arg0: i32, %arg1: memref<2x1x16x16xf32, #tpu.memory_space<vmem>>, %arg2: memref<36xf32, #tpu.memory_space<smem>>, %arg3: memref<4xf32, #tpu.memory_space<smem>>, %arg4: memref<4xf32, #tpu.memory_space<smem>>, %arg5: memref<1x8x128xf32, #tpu.memory_space<vmem>>) attributes {dimension_semantics = [#tpu.dimension_semantics<arbitrary>], iteration_bounds = array<i64: 1>, scalar_prefetch = 0 : i64, scratch_operands = 0 : i64, tpu.core_type = #tpu.core_type<tc>, window_params = [{pipeline_mode = #tpu.pipeline_mode<synchronous>, transform_indices = @transform_0, window_bounds = array<i64: 2, 1, 16, 16>}, {transform_indices = @transform_1, window_bounds = array<i64: 36>}, {transform_indices = @transform_2, window_bounds = array<i64: 4>}, {transform_indices = @transform_3, window_bounds = array<i64: 4>}, {pipeline_mode = #tpu.pipeline_mode<synchronous>, transform_indices = @transform_4, window_bounds = array<i64: 1, 8, 128>}]} {
    %c0 = arith.constant 0 : index
    %c0_0 = arith.constant 0 : index
    %c0_1 = arith.constant 0 : index
    %c0_2 = arith.constant 0 : index
    %0 = vector.load %arg1[%c0, %c0_0, %c0_1, %c0_2] : memref<2x1x16x16xf32, #tpu.memory_space<vmem>>, vector<2x1x16x16xf32>
    %1 = vector.shape_cast %0 : vector<2x1x16x16xf32> to vector<2x16x16xf32>
    %2 = vector.extract_strided_slice %1 {offsets = [0, 0, 0], sizes = [2, 14, 14], strides = [1, 1, 1]} : vector<2x16x16xf32> to vector<2x14x14xf32>
    %c0_3 = arith.constant 0 : index
    %3 = memref.load %arg2[%c0_3] : memref<36xf32, #tpu.memory_space<smem>>
    %4 = vector.broadcast %3 : f32 to vector<2x14x14xf32>
    %5 = arith.mulf %4, %2 : vector<2x14x14xf32>
    %c9 = arith.constant 9 : index
    %6 = memref.load %arg2[%c9] : memref<36xf32, #tpu.memory_space<smem>>
    %7 = vector.broadcast %6 : f32 to vector<2x14x14xf32>
    %8 = arith.mulf %7, %2 : vector<2x14x14xf32>
    %c18 = arith.constant 18 : index
    %9 = memref.load %arg2[%c18] : memref<36xf32, #tpu.memory_space<smem>>
    %10 = vector.broadcast %9 : f32 to vector<2x14x14xf32>
    %11 = arith.mulf %10, %2 : vector<2x14x14xf32>
    %c27 = arith.constant 27 : index
    %12 = memref.load %arg2[%c27] : memref<36xf32, #tpu.memory_space<smem>>
    %13 = vector.broadcast %12 : f32 to vector<2x14x14xf32>
    %14 = arith.mulf %13, %2 : vector<2x14x14xf32>
    %15 = vector.extract_strided_slice %1 {offsets = [0, 0, 1], sizes = [2, 14, 14], strides = [1, 1, 1]} : vector<2x16x16xf32> to vector<2x14x14xf32>
    %c1 = arith.constant 1 : index
    %16 = memref.load %arg2[%c1] : memref<36xf32, #tpu.memory_space<smem>>
    %17 = vector.broadcast %16 : f32 to vector<2x14x14xf32>
    %18 = arith.mulf %17, %15 : vector<2x14x14xf32>
    %19 = arith.addf %5, %18 : vector<2x14x14xf32>
    %c10 = arith.constant 10 : index
    %20 = memref.load %arg2[%c10] : memref<36xf32, #tpu.memory_space<smem>>
    %21 = vector.broadcast %20 : f32 to vector<2x14x14xf32>
    %22 = arith.mulf %21, %15 : vector<2x14x14xf32>
    %23 = arith.addf %8, %22 : vector<2x14x14xf32>
    %c19 = arith.constant 19 : index
    %24 = memref.load %arg2[%c19] : memref<36xf32, #tpu.memory_space<smem>>
    %25 = vector.broadcast %24 : f32 to vector<2x14x14xf32>
    %26 = arith.mulf %25, %15 : vector<2x14x14xf32>
    %27 = arith.addf %11, %26 : vector<2x14x14xf32>
    %c28 = arith.constant 28 : index
    %28 = memref.load %arg2[%c28] : memref<36xf32, #tpu.memory_space<smem>>
    %29 = vector.broadcast %28 : f32 to vector<2x14x14xf32>
    %30 = arith.mulf %29, %15 : vector<2x14x14xf32>
    %31 = arith.addf %14, %30 : vector<2x14x14xf32>
    %32 = vector.extract_strided_slice %1 {offsets = [0, 0, 2], sizes = [2, 14, 14], strides = [1, 1, 1]} : vector<2x16x16xf32> to vector<2x14x14xf32>
    %c2 = arith.constant 2 : index
    %33 = memref.load %arg2[%c2] : memref<36xf32, #tpu.memory_space<smem>>
    %34 = vector.broadcast %33 : f32 to vector<2x14x14xf32>
    %35 = arith.mulf %34, %32 : vector<2x14x14xf32>
    %36 = arith.addf %19, %35 : vector<2x14x14xf32>
    %c11 = arith.constant 11 : index
    %37 = memref.load %arg2[%c11] : memref<36xf32, #tpu.memory_space<smem>>
    %38 = vector.broadcast %37 : f32 to vector<2x14x14xf32>
    %39 = arith.mulf %38, %32 : vector<2x14x14xf32>
    %40 = arith.addf %23, %39 : vector<2x14x14xf32>
    %c20 = arith.constant 20 : index
    %41 = memref.load %arg2[%c20] : memref<36xf32, #tpu.memory_space<smem>>
    %42 = vector.broadcast %41 : f32 to vector<2x14x14xf32>
    %43 = arith.mulf %42, %32 : vector<2x14x14xf32>
    %44 = arith.addf %27, %43 : vector<2x14x14xf32>
    %c29 = arith.constant 29 : index
    %45 = memref.load %arg2[%c29] : memref<36xf32, #tpu.memory_space<smem>>
    %46 = vector.broadcast %45 : f32 to vector<2x14x14xf32>
    %47 = arith.mulf %46, %32 : vector<2x14x14xf32>
    %48 = arith.addf %31, %47 : vector<2x14x14xf32>
    %49 = vector.extract_strided_slice %1 {offsets = [0, 1, 0], sizes = [2, 14, 14], strides = [1, 1, 1]} : vector<2x16x16xf32> to vector<2x14x14xf32>
    %c3 = arith.constant 3 : index
    %50 = memref.load %arg2[%c3] : memref<36xf32, #tpu.memory_space<smem>>
    %51 = vector.broadcast %50 : f32 to vector<2x14x14xf32>
    %52 = arith.mulf %51, %49 : vector<2x14x14xf32>
    %53 = arith.addf %36, %52 : vector<2x14x14xf32>
    %c12 = arith.constant 12 : index
    %54 = memref.load %arg2[%c12] : memref<36xf32, #tpu.memory_space<smem>>
    %55 = vector.broadcast %54 : f32 to vector<2x14x14xf32>
    %56 = arith.mulf %55, %49 : vector<2x14x14xf32>
    %57 = arith.addf %40, %56 : vector<2x14x14xf32>
    %c21 = arith.constant 21 : index
    %58 = memref.load %arg2[%c21] : memref<36xf32, #tpu.memory_space<smem>>
    %59 = vector.broadcast %58 : f32 to vector<2x14x14xf32>
    %60 = arith.mulf %59, %49 : vector<2x14x14xf32>
    %61 = arith.addf %44, %60 : vector<2x14x14xf32>
    %c30 = arith.constant 30 : index
    %62 = memref.load %arg2[%c30] : memref<36xf32, #tpu.memory_space<smem>>
    %63 = vector.broadcast %62 : f32 to vector<2x14x14xf32>
    %64 = arith.mulf %63, %49 : vector<2x14x14xf32>
    %65 = arith.addf %48, %64 : vector<2x14x14xf32>
    %66 = vector.extract_strided_slice %1 {offsets = [0, 1, 1], sizes = [2, 14, 14], strides = [1, 1, 1]} : vector<2x16x16xf32> to vector<2x14x14xf32>
    %c4 = arith.constant 4 : index
    %67 = memref.load %arg2[%c4] : memref<36xf32, #tpu.memory_space<smem>>
    %68 = vector.broadcast %67 : f32 to vector<2x14x14xf32>
    %69 = arith.mulf %68, %66 : vector<2x14x14xf32>
    %70 = arith.addf %53, %69 : vector<2x14x14xf32>
    %c13 = arith.constant 13 : index
    %71 = memref.load %arg2[%c13] : memref<36xf32, #tpu.memory_space<smem>>
    %72 = vector.broadcast %71 : f32 to vector<2x14x14xf32>
    %73 = arith.mulf %72, %66 : vector<2x14x14xf32>
    %74 = arith.addf %57, %73 : vector<2x14x14xf32>
    %c22 = arith.constant 22 : index
    %75 = memref.load %arg2[%c22] : memref<36xf32, #tpu.memory_space<smem>>
    %76 = vector.broadcast %75 : f32 to vector<2x14x14xf32>
    %77 = arith.mulf %76, %66 : vector<2x14x14xf32>
    %78 = arith.addf %61, %77 : vector<2x14x14xf32>
    %c31 = arith.constant 31 : index
    %79 = memref.load %arg2[%c31] : memref<36xf32, #tpu.memory_space<smem>>
    %80 = vector.broadcast %79 : f32 to vector<2x14x14xf32>
    %81 = arith.mulf %80, %66 : vector<2x14x14xf32>
    %82 = arith.addf %65, %81 : vector<2x14x14xf32>
    %83 = vector.extract_strided_slice %1 {offsets = [0, 1, 2], sizes = [2, 14, 14], strides = [1, 1, 1]} : vector<2x16x16xf32> to vector<2x14x14xf32>
    %c5 = arith.constant 5 : index
    %84 = memref.load %arg2[%c5] : memref<36xf32, #tpu.memory_space<smem>>
    %85 = vector.broadcast %84 : f32 to vector<2x14x14xf32>
    %86 = arith.mulf %85, %83 : vector<2x14x14xf32>
    %87 = arith.addf %70, %86 : vector<2x14x14xf32>
    %c14 = arith.constant 14 : index
    %88 = memref.load %arg2[%c14] : memref<36xf32, #tpu.memory_space<smem>>
    %89 = vector.broadcast %88 : f32 to vector<2x14x14xf32>
    %90 = arith.mulf %89, %83 : vector<2x14x14xf32>
    %91 = arith.addf %74, %90 : vector<2x14x14xf32>
    %c23 = arith.constant 23 : index
    %92 = memref.load %arg2[%c23] : memref<36xf32, #tpu.memory_space<smem>>
    %93 = vector.broadcast %92 : f32 to vector<2x14x14xf32>
    %94 = arith.mulf %93, %83 : vector<2x14x14xf32>
    %95 = arith.addf %78, %94 : vector<2x14x14xf32>
    %c32 = arith.constant 32 : index
    %96 = memref.load %arg2[%c32] : memref<36xf32, #tpu.memory_space<smem>>
    %97 = vector.broadcast %96 : f32 to vector<2x14x14xf32>
    %98 = arith.mulf %97, %83 : vector<2x14x14xf32>
    %99 = arith.addf %82, %98 : vector<2x14x14xf32>
    %100 = vector.extract_strided_slice %1 {offsets = [0, 2, 0], sizes = [2, 14, 14], strides = [1, 1, 1]} : vector<2x16x16xf32> to vector<2x14x14xf32>
    %c6 = arith.constant 6 : index
    %101 = memref.load %arg2[%c6] : memref<36xf32, #tpu.memory_space<smem>>
    %102 = vector.broadcast %101 : f32 to vector<2x14x14xf32>
    %103 = arith.mulf %102, %100 : vector<2x14x14xf32>
    %104 = arith.addf %87, %103 : vector<2x14x14xf32>
    %c15 = arith.constant 15 : index
    %105 = memref.load %arg2[%c15] : memref<36xf32, #tpu.memory_space<smem>>
    %106 = vector.broadcast %105 : f32 to vector<2x14x14xf32>
    %107 = arith.mulf %106, %100 : vector<2x14x14xf32>
    %108 = arith.addf %91, %107 : vector<2x14x14xf32>
    %c24 = arith.constant 24 : index
    %109 = memref.load %arg2[%c24] : memref<36xf32, #tpu.memory_space<smem>>
    %110 = vector.broadcast %109 : f32 to vector<2x14x14xf32>
    %111 = arith.mulf %110, %100 : vector<2x14x14xf32>
    %112 = arith.addf %95, %111 : vector<2x14x14xf32>
    %c33 = arith.constant 33 : index
    %113 = memref.load %arg2[%c33] : memref<36xf32, #tpu.memory_space<smem>>
    %114 = vector.broadcast %113 : f32 to vector<2x14x14xf32>
    %115 = arith.mulf %114, %100 : vector<2x14x14xf32>
    %116 = arith.addf %99, %115 : vector<2x14x14xf32>
    %117 = vector.extract_strided_slice %1 {offsets = [0, 2, 1], sizes = [2, 14, 14], strides = [1, 1, 1]} : vector<2x16x16xf32> to vector<2x14x14xf32>
    %c7 = arith.constant 7 : index
    %118 = memref.load %arg2[%c7] : memref<36xf32, #tpu.memory_space<smem>>
    %119 = vector.broadcast %118 : f32 to vector<2x14x14xf32>
    %120 = arith.mulf %119, %117 : vector<2x14x14xf32>
    %121 = arith.addf %104, %120 : vector<2x14x14xf32>
    %c16 = arith.constant 16 : index
    %122 = memref.load %arg2[%c16] : memref<36xf32, #tpu.memory_space<smem>>
    %123 = vector.broadcast %122 : f32 to vector<2x14x14xf32>
    %124 = arith.mulf %123, %117 : vector<2x14x14xf32>
    %125 = arith.addf %108, %124 : vector<2x14x14xf32>
    %c25 = arith.constant 25 : index
    %126 = memref.load %arg2[%c25] : memref<36xf32, #tpu.memory_space<smem>>
    %127 = vector.broadcast %126 : f32 to vector<2x14x14xf32>
    %128 = arith.mulf %127, %117 : vector<2x14x14xf32>
    %129 = arith.addf %112, %128 : vector<2x14x14xf32>
    %c34 = arith.constant 34 : index
    %130 = memref.load %arg2[%c34] : memref<36xf32, #tpu.memory_space<smem>>
    %131 = vector.broadcast %130 : f32 to vector<2x14x14xf32>
    %132 = arith.mulf %131, %117 : vector<2x14x14xf32>
    %133 = arith.addf %116, %132 : vector<2x14x14xf32>
    %134 = vector.extract_strided_slice %1 {offsets = [0, 2, 2], sizes = [2, 14, 14], strides = [1, 1, 1]} : vector<2x16x16xf32> to vector<2x14x14xf32>
    %c8 = arith.constant 8 : index
    %135 = memref.load %arg2[%c8] : memref<36xf32, #tpu.memory_space<smem>>
    %136 = vector.broadcast %135 : f32 to vector<2x14x14xf32>
    %137 = arith.mulf %136, %134 : vector<2x14x14xf32>
    %138 = arith.addf %121, %137 : vector<2x14x14xf32>
    %c17 = arith.constant 17 : index
    %139 = memref.load %arg2[%c17] : memref<36xf32, #tpu.memory_space<smem>>
    %140 = vector.broadcast %139 : f32 to vector<2x14x14xf32>
    %141 = arith.mulf %140, %134 : vector<2x14x14xf32>
    %142 = arith.addf %125, %141 : vector<2x14x14xf32>
    %c26 = arith.constant 26 : index
    %143 = memref.load %arg2[%c26] : memref<36xf32, #tpu.memory_space<smem>>
    %144 = vector.broadcast %143 : f32 to vector<2x14x14xf32>
    %145 = arith.mulf %144, %134 : vector<2x14x14xf32>
    %146 = arith.addf %129, %145 : vector<2x14x14xf32>
    %c35 = arith.constant 35 : index
    %147 = memref.load %arg2[%c35] : memref<36xf32, #tpu.memory_space<smem>>
    %148 = vector.broadcast %147 : f32 to vector<2x14x14xf32>
    %149 = arith.mulf %148, %134 : vector<2x14x14xf32>
    %150 = arith.addf %133, %149 : vector<2x14x14xf32>
    %151 = arith.mulf %138, %138 : vector<2x14x14xf32>
    %152 = arith.mulf %142, %142 : vector<2x14x14xf32>
    %153 = arith.mulf %146, %146 : vector<2x14x14xf32>
    %154 = arith.mulf %150, %150 : vector<2x14x14xf32>
    %155 = tpu.concatenate %138, %142, %146, %150, %151, %152, %153, %154 in 0 : vector<2x14x14xf32>, vector<2x14x14xf32>, vector<2x14x14xf32>, vector<2x14x14xf32>, vector<2x14x14xf32>, vector<2x14x14xf32>, vector<2x14x14xf32>, vector<2x14x14xf32> -> vector<16x14x14xf32>
    %cst = arith.constant dense<0.000000e+00> : vector<16x14xf32>
    %156 = vector.multi_reduction <add>, %155, %cst [2] : vector<16x14x14xf32> to vector<16x14xf32>
    %157 = vector.shape_cast %156 : vector<16x14xf32> to vector<16x14x1xf32>
    %158 = vector.extract_strided_slice %157 {offsets = [0, 0, 0], sizes = [2, 14, 1], strides = [1, 1, 1]} : vector<16x14x1xf32> to vector<2x14x1xf32>
    %159 = vector.shape_cast %158 : vector<2x14x1xf32> to vector<1x2x14x1xf32>
    %cst_4 = arith.constant dense<0.000000e+00> : vector<1xf32>
    %160 = vector.multi_reduction <add>, %159, %cst_4 [1, 2, 3] : vector<1x2x14x1xf32> to vector<1xf32>
    %161 = vector.shape_cast %160 : vector<1xf32> to vector<1x1x1x1xf32>
    %162 = vector.extract %161[0, 0, 0, 0] : f32 from vector<1x1x1x1xf32>
    %163 = vector.extract_strided_slice %157 {offsets = [8, 0, 0], sizes = [2, 14, 1], strides = [1, 1, 1]} : vector<16x14x1xf32> to vector<2x14x1xf32>
    %164 = vector.shape_cast %163 : vector<2x14x1xf32> to vector<1x2x14x1xf32>
    %cst_5 = arith.constant dense<0.000000e+00> : vector<1xf32>
    %165 = vector.multi_reduction <add>, %164, %cst_5 [1, 2, 3] : vector<1x2x14x1xf32> to vector<1xf32>
    %166 = vector.shape_cast %165 : vector<1xf32> to vector<1x1x1x1xf32>
    %167 = vector.extract %166[0, 0, 0, 0] : f32 from vector<1x1x1x1xf32>
    %cst_6 = arith.constant 0.00255102036 : f32
    %168 = arith.mulf %162, %cst_6 : f32
    %cst_7 = arith.constant 0.00255102036 : f32
    %169 = arith.mulf %167, %cst_7 : f32
    %170 = arith.mulf %168, %168 : f32
    %171 = arith.subf %169, %170 : f32
    %cst_8 = arith.constant 9.99999974E-6 : f32
    %172 = arith.addf %171, %cst_8 : f32
    %173 = math.rsqrt %172 : f32
    %c0_9 = arith.constant 0 : index
    %174 = memref.load %arg3[%c0_9] : memref<4xf32, #tpu.memory_space<smem>>
    %175 = arith.mulf %173, %174 : f32
    %c0_10 = arith.constant 0 : index
    %176 = memref.load %arg4[%c0_10] : memref<4xf32, #tpu.memory_space<smem>>
    %177 = arith.mulf %168, %175 : f32
    %178 = arith.subf %176, %177 : f32
    %179 = vector.broadcast %175 : f32 to vector<2x14x14xf32>
    %180 = arith.mulf %138, %179 : vector<2x14x14xf32>
    %181 = vector.broadcast %178 : f32 to vector<2x14x14xf32>
    %182 = arith.addf %180, %181 : vector<2x14x14xf32>
    %cst_11 = arith.constant 0.000000e+00 : f32
    %183 = vector.broadcast %cst_11 : f32 to vector<2x14x14xf32>
    %184 = arith.maximumf %182, %183 : vector<2x14x14xf32>
    %185 = vector.extract_strided_slice %157 {offsets = [2, 0, 0], sizes = [2, 14, 1], strides = [1, 1, 1]} : vector<16x14x1xf32> to vector<2x14x1xf32>
    %186 = vector.shape_cast %185 : vector<2x14x1xf32> to vector<1x2x14x1xf32>
    %cst_12 = arith.constant dense<0.000000e+00> : vector<1xf32>
    %187 = vector.multi_reduction <add>, %186, %cst_12 [1, 2, 3] : vector<1x2x14x1xf32> to vector<1xf32>
    %188 = vector.shape_cast %187 : vector<1xf32> to vector<1x1x1x1xf32>
    %189 = vector.extract %188[0, 0, 0, 0] : f32 from vector<1x1x1x1xf32>
    %190 = vector.extract_strided_slice %157 {offsets = [10, 0, 0], sizes = [2, 14, 1], strides = [1, 1, 1]} : vector<16x14x1xf32> to vector<2x14x1xf32>
    %191 = vector.shape_cast %190 : vector<2x14x1xf32> to vector<1x2x14x1xf32>
    %cst_13 = arith.constant dense<0.000000e+00> : vector<1xf32>
    %192 = vector.multi_reduction <add>, %191, %cst_13 [1, 2, 3] : vector<1x2x14x1xf32> to vector<1xf32>
    %193 = vector.shape_cast %192 : vector<1xf32> to vector<1x1x1x1xf32>
    %194 = vector.extract %193[0, 0, 0, 0] : f32 from vector<1x1x1x1xf32>
    %cst_14 = arith.constant 0.00255102036 : f32
    %195 = arith.mulf %189, %cst_14 : f32
    %cst_15 = arith.constant 0.00255102036 : f32
    %196 = arith.mulf %194, %cst_15 : f32
    %197 = arith.mulf %195, %195 : f32
    %198 = arith.subf %196, %197 : f32
    %cst_16 = arith.constant 9.99999974E-6 : f32
    %199 = arith.addf %198, %cst_16 : f32
    %200 = math.rsqrt %199 : f32
    %c1_17 = arith.constant 1 : index
    %201 = memref.load %arg3[%c1_17] : memref<4xf32, #tpu.memory_space<smem>>
    %202 = arith.mulf %200, %201 : f32
    %c1_18 = arith.constant 1 : index
    %203 = memref.load %arg4[%c1_18] : memref<4xf32, #tpu.memory_space<smem>>
    %204 = arith.mulf %195, %202 : f32
    %205 = arith.subf %203, %204 : f32
    %206 = vector.broadcast %202 : f32 to vector<2x14x14xf32>
    %207 = arith.mulf %142, %206 : vector<2x14x14xf32>
    %208 = vector.broadcast %205 : f32 to vector<2x14x14xf32>
    %209 = arith.addf %207, %208 : vector<2x14x14xf32>
    %cst_19 = arith.constant 0.000000e+00 : f32
    %210 = vector.broadcast %cst_19 : f32 to vector<2x14x14xf32>
    %211 = arith.maximumf %209, %210 : vector<2x14x14xf32>
    %212 = arith.addf %184, %211 : vector<2x14x14xf32>
    %213 = vector.extract_strided_slice %157 {offsets = [4, 0, 0], sizes = [2, 14, 1], strides = [1, 1, 1]} : vector<16x14x1xf32> to vector<2x14x1xf32>
    %214 = vector.shape_cast %213 : vector<2x14x1xf32> to vector<1x2x14x1xf32>
    %cst_20 = arith.constant dense<0.000000e+00> : vector<1xf32>
    %215 = vector.multi_reduction <add>, %214, %cst_20 [1, 2, 3] : vector<1x2x14x1xf32> to vector<1xf32>
    %216 = vector.shape_cast %215 : vector<1xf32> to vector<1x1x1x1xf32>
    %217 = vector.extract %216[0, 0, 0, 0] : f32 from vector<1x1x1x1xf32>
    %218 = vector.extract_strided_slice %157 {offsets = [12, 0, 0], sizes = [2, 14, 1], strides = [1, 1, 1]} : vector<16x14x1xf32> to vector<2x14x1xf32>
    %219 = vector.shape_cast %218 : vector<2x14x1xf32> to vector<1x2x14x1xf32>
    %cst_21 = arith.constant dense<0.000000e+00> : vector<1xf32>
    %220 = vector.multi_reduction <add>, %219, %cst_21 [1, 2, 3] : vector<1x2x14x1xf32> to vector<1xf32>
    %221 = vector.shape_cast %220 : vector<1xf32> to vector<1x1x1x1xf32>
    %222 = vector.extract %221[0, 0, 0, 0] : f32 from vector<1x1x1x1xf32>
    %cst_22 = arith.constant 0.00255102036 : f32
    %223 = arith.mulf %217, %cst_22 : f32
    %cst_23 = arith.constant 0.00255102036 : f32
    %224 = arith.mulf %222, %cst_23 : f32
    %225 = arith.mulf %223, %223 : f32
    %226 = arith.subf %224, %225 : f32
    %cst_24 = arith.constant 9.99999974E-6 : f32
    %227 = arith.addf %226, %cst_24 : f32
    %228 = math.rsqrt %227 : f32
    %c2_25 = arith.constant 2 : index
    %229 = memref.load %arg3[%c2_25] : memref<4xf32, #tpu.memory_space<smem>>
    %230 = arith.mulf %228, %229 : f32
    %c2_26 = arith.constant 2 : index
    %231 = memref.load %arg4[%c2_26] : memref<4xf32, #tpu.memory_space<smem>>
    %232 = arith.mulf %223, %230 : f32
    %233 = arith.subf %231, %232 : f32
    %234 = vector.broadcast %230 : f32 to vector<2x14x14xf32>
    %235 = arith.mulf %146, %234 : vector<2x14x14xf32>
    %236 = vector.broadcast %233 : f32 to vector<2x14x14xf32>
    %237 = arith.addf %235, %236 : vector<2x14x14xf32>
    %cst_27 = arith.constant 0.000000e+00 : f32
    %238 = vector.broadcast %cst_27 : f32 to vector<2x14x14xf32>
    %239 = arith.maximumf %237, %238 : vector<2x14x14xf32>
    %240 = arith.addf %212, %239 : vector<2x14x14xf32>
    %241 = vector.extract_strided_slice %157 {offsets = [6, 0, 0], sizes = [2, 14, 1], strides = [1, 1, 1]} : vector<16x14x1xf32> to vector<2x14x1xf32>
    %242 = vector.shape_cast %241 : vector<2x14x1xf32> to vector<1x2x14x1xf32>
    %cst_28 = arith.constant dense<0.000000e+00> : vector<1xf32>
    %243 = vector.multi_reduction <add>, %242, %cst_28 [1, 2, 3] : vector<1x2x14x1xf32> to vector<1xf32>
    %244 = vector.shape_cast %243 : vector<1xf32> to vector<1x1x1x1xf32>
    %245 = vector.extract %244[0, 0, 0, 0] : f32 from vector<1x1x1x1xf32>
    %246 = vector.extract_strided_slice %157 {offsets = [14, 0, 0], sizes = [2, 14, 1], strides = [1, 1, 1]} : vector<16x14x1xf32> to vector<2x14x1xf32>
    %247 = vector.shape_cast %246 : vector<2x14x1xf32> to vector<1x2x14x1xf32>
    %cst_29 = arith.constant dense<0.000000e+00> : vector<1xf32>
    %248 = vector.multi_reduction <add>, %247, %cst_29 [1, 2, 3] : vector<1x2x14x1xf32> to vector<1xf32>
    %249 = vector.shape_cast %248 : vector<1xf32> to vector<1x1x1x1xf32>
    %250 = vector.extract %249[0, 0, 0, 0] : f32 from vector<1x1x1x1xf32>
    %cst_30 = arith.constant 0.00255102036 : f32
    %251 = arith.mulf %245, %cst_30 : f32
    %cst_31 = arith.constant 0.00255102036 : f32
    %252 = arith.mulf %250, %cst_31 : f32
    %253 = arith.mulf %251, %251 : f32
    %254 = arith.subf %252, %253 : f32
    %cst_32 = arith.constant 9.99999974E-6 : f32
    %255 = arith.addf %254, %cst_32 : f32
    %256 = math.rsqrt %255 : f32
    %c3_33 = arith.constant 3 : index
    %257 = memref.load %arg3[%c3_33] : memref<4xf32, #tpu.memory_space<smem>>
    %258 = arith.mulf %256, %257 : f32
    %c3_34 = arith.constant 3 : index
    %259 = memref.load %arg4[%c3_34] : memref<4xf32, #tpu.memory_space<smem>>
    %260 = arith.mulf %251, %258 : f32
    %261 = arith.subf %259, %260 : f32
    %262 = vector.broadcast %258 : f32 to vector<2x14x14xf32>
    %263 = arith.mulf %150, %262 : vector<2x14x14xf32>
    %264 = vector.broadcast %261 : f32 to vector<2x14x14xf32>
    %265 = arith.addf %263, %264 : vector<2x14x14xf32>
    %cst_35 = arith.constant 0.000000e+00 : f32
    %266 = vector.broadcast %cst_35 : f32 to vector<2x14x14xf32>
    %267 = arith.maximumf %265, %266 : vector<2x14x14xf32>
    %268 = arith.addf %240, %267 : vector<2x14x14xf32>
    %269 = vector.shape_cast %268 : vector<2x14x14xf32> to vector<1x2x14x14xf32>
    %cst_36 = arith.constant dense<0.000000e+00> : vector<1xf32>
    %270 = vector.multi_reduction <add>, %269, %cst_36 [1, 2, 3] : vector<1x2x14x14xf32> to vector<1xf32>
    %271 = vector.shape_cast %270 : vector<1xf32> to vector<1x1x1x1xf32>
    %272 = vector.extract %271[0, 0, 0, 0] : f32 from vector<1x1x1x1xf32>
    %cst_37 = arith.constant 0.000000e+00 : f32
    %273 = vector.broadcast %cst_37 : f32 to vector<1x8x128xf32>
    %274 = vector.broadcast %272 : f32 to vector<1x8x128xf32>
    %275 = arith.addf %274, %273 : vector<1x8x128xf32>
    %c0_38 = arith.constant 0 : index
    %c0_39 = arith.constant 0 : index
    %c0_40 = arith.constant 0 : index
    %276 = vector.load %arg5[%c0_38, %c0_39, %c0_40] : memref<1x8x128xf32, #tpu.memory_space<vmem>>, vector<1x8x128xf32>
    tpu.vector_store %arg5[%c0_38, %c0_39, %c0_40], %275 {strides = array<i32>} : memref<1x8x128xf32, #tpu.memory_space<vmem>>, vector<1x8x128xf32>,
    return
  }
  func.func @transform_0(%arg0: i32) -> (i32, i32, i32, i32) {
    %c0_i32 = arith.constant 0 : i32
    %c0_i32_0 = arith.constant 0 : i32
    %c0_i32_1 = arith.constant 0 : i32
    %c0_i32_2 = arith.constant 0 : i32
    %c0_i32_3 = arith.constant 0 : i32
    return %c0_i32, %c0_i32_0, %c0_i32_1, %c0_i32_2 : i32, i32, i32, i32
  }
  func.func @transform_1(%arg0: i32) -> i32 {
    %c0_i32 = arith.constant 0 : i32
    %c0_i32_0 = arith.constant 0 : i32
    return %c0_i32 : i32
  }
  func.func @transform_2(%arg0: i32) -> i32 {
    %c0_i32 = arith.constant 0 : i32
    %c0_i32_0 = arith.constant 0 : i32
    return %c0_i32 : i32
  }
  func.func @transform_3(%arg0: i32) -> i32 {
    %c0_i32 = arith.constant 0 : i32
    %c0_i32_0 = arith.constant 0 : i32
    return %c0_i32 : i32
  }
  func.func @transform_4(%arg0: i32) -> (i32, i32, i32) {
    %c0_i32 = arith.constant 0 : i32
    %c0_i32_0 = arith.constant 0 : i32
    %c0_i32_1 = arith.constant 0 : i32
    %c0_i32_2 = arith.constant 0 : i32
    return %c0_i32, %c0_i32_0, %c0_i32_1 : i32, i32, i32
  }
}

</mosaic_0001>

<llo_original>
// kernel: model_forward.1
$region0: #{model_forward.1}
  #allocation0 [shape = 'u32[]', space=smem, size = 0x4, offset = 0x4, fixed_abs, tag = 'smem constant byte address 0x4 - core index']
  #allocation1 [shape = 'u32[144,128]{1,0:T(1,128)}', space=vmem, size = 0x12000, scoped, tag = 'internal scratch']
  %s0 = inlined_call_operand.hbm [shape: f32[2,1,16,16], index: 0, kind: input, shape index: {}]
  %s1 = inlined_call_operand.vmem [shape: f32[36], index: 1, kind: input, shape index: {}]
  %s2 = inlined_call_operand.vmem [shape: f32[4], index: 2, kind: input, shape index: {}]
  %s3 = inlined_call_operand.vmem [shape: f32[4], index: 3, kind: input, shape index: {}]
  %s4 = inlined_call_operand.vmem [shape: f32[1,8,128], index: 4, kind: output, shape index: {}]
  %s5 = sld [smem:[#allocation0]]
  $region42: #{model_forward.1} parent=0
    _
  %s7 = ssub.s32 1, %s5
  %s8 = scalar_select 0, %s7, %s5
  $region1: #{model_forward.1} parent=0
    #allocation2 [shape = 'u8[16384]{0}', space=vmem, size = 0x4000, scoped, tag = 'input window, operand 0, single buffered']
    #allocation3 [shape = 's32[1]{0}', space=sflag, size = 0x4, scoped, tag = 'scoped memory for model_forward.1']
    #allocation4 [shape = 's32[1]{0}', space=sflag, size = 0x4, scoped, tag = 'scoped memory for model_forward.1']
    #allocation5 [shape = 'u8[512]{0}', space=smem, size = 0x200, scoped, tag = 'input window, operand 1, single buffered']
    #allocation6 [shape = 'u8[512]{0}', space=smem, size = 0x200, scoped, tag = 'input window, operand 2, single buffered']
    #allocation7 [shape = 's32[1]{0}', space=sflag, size = 0x4, scoped, tag = 'scoped memory for model_forward.1']
    #allocation8 [shape = 'u8[512]{0}', space=smem, size = 0x200, scoped, tag = 'input window, operand 3, single buffered']
    %9 = vsyncpa [#allocation3], 0
    %10 = vsyncpa [#allocation4], 0
    %11 = vsyncpa [#allocation7], 0
    // Predicated region
    $region2: #{model_forward.1} parent=1 // pred_check
      _
    $region3: #{model_forward.1} parent=1 // pred_check_branch
      %13 = sbr.rel (0) target = $region5
    $region4: #{model_forward.1} parent=1 // pred_region
      %s15 = ssub.s32 512, 512
      %16 = vsyncadd [#allocation3], %s15
      %s17 = sshll.u32 [#allocation2], 4
      %s18 = int_to_ptr.vmem [resolvable:$true] %s17
      %23 = dma.hbm_to_vmem [thread:$0]  %s0, 512, %s18, [#allocation3], 128, 128, 8
    $region5: #{model_forward.1} parent=1 // pred_fallthru
      _
    // Predicated region
    $region6: #{model_forward.1} parent=1 // pred_check
      _
    $region7: #{model_forward.1} parent=1 // pred_check_branch
      %25 = sbr.rel (0) target = $region9
    $region8: #{model_forward.1} parent=1 // pred_region
      %s27 = ssub.s32 16, 16
      %28 = vsyncadd [#allocation4], %s27
      %s30 = sshll.u32 %s1, 4
      %s31 = int_to_ptr.vmem [resolvable:$true] %s30
      %33 = dma.vmem_to_smem %s31, 16, [#allocation5], [#allocation4]
    $region9: #{model_forward.1} parent=1 // pred_fallthru
      _
    // Predicated region
    $region10: #{model_forward.1} parent=1 // pred_check
      _
    $region11: #{model_forward.1} parent=1 // pred_check_branch
      %35 = sbr.rel (0) target = $region13
    $region12: #{model_forward.1} parent=1 // pred_region
      %s37 = ssub.s32 16, 16
      %38 = vsyncadd [#allocation7], %s37
      %s40 = sshll.u32 %s2, 4
      %s41 = int_to_ptr.vmem [resolvable:$true] %s40
      %43 = dma.vmem_to_smem %s41, 16, [#allocation6], [#allocation7]
    $region13: #{model_forward.1} parent=1 // pred_fallthru
      _
    // Predicated region
    $region14: #{model_forward.1} parent=1 // pred_check
      _
    $region15: #{model_forward.1} parent=1 // pred_check_branch
      %45 = sbr.rel (0) target = $region17
    $region16: #{model_forward.1} parent=1 // pred_region
      %s47 = ssub.s32 16, 16
      %48 = vsyncadd [#allocation7], %s47
      %s50 = sshll.u32 %s3, 4
      %s51 = int_to_ptr.vmem [resolvable:$true] %s50
      %53 = dma.vmem_to_smem %s51, 16, [#allocation8], [#allocation7]
    $region17: #{model_forward.1} parent=1 // pred_fallthru
      _
    // Predicated region
    $region18: #{model_forward.1} parent=1 // pred_check
      _
    $region19: #{model_forward.1} parent=1 // pred_check_branch
      %55 = sbr.rel (0) target = $region21
    $region20: #{model_forward.1} parent=1 // pred_region
      %56 = dma.done [#allocation3], 512
    $region21: #{model_forward.1} parent=1 // pred_fallthru
      _
    // Predicated region
    $region22: #{model_forward.1} parent=1 // pred_check
      _
    $region23: #{model_forward.1} parent=1 // pred_check_branch
      %58 = sbr.rel (0) target = $region25
    $region24: #{model_forward.1} parent=1 // pred_region
      %59 = dma.done [#allocation4], 16
    $region25: #{model_forward.1} parent=1 // pred_fallthru
      _
    // Predicated region
    $region26: #{model_forward.1} parent=1 // pred_check
      _
    $region27: #{model_forward.1} parent=1 // pred_check_branch
      %61 = sbr.rel (0) target = $region29
    $region28: #{model_forward.1} parent=1 // pred_region
      %62 = dma.done [#allocation7], 16
    $region29: #{model_forward.1} parent=1 // pred_fallthru
      _
    // Predicated region
    $region30: #{model_forward.1} parent=1 // pred_check
      _
    $region31: #{model_forward.1} parent=1 // pred_check_branch
      %64 = sbr.rel (0) target = $region33
    $region32: #{model_forward.1} parent=1 // pred_region
      %65 = dma.done [#allocation7], 16
    $region33: #{model_forward.1} parent=1 // pred_fallthru
      _
    %66 = sfence
    %v67 = vld [vmem:[#allocation2] sm:$0xff]
    %v68 = vld [vmem:[#allocation2 + $0x8] sm:$0xff]
    %v69 = vld [vmem:[#allocation2 + $0x10] sm:$0xff]
    %v70 = vld [vmem:[#allocation2 + $0x18] sm:$0xff]
    %s71 = sld [smem:[#allocation5]]
    %v72 = vstv %s71
    %v73 = vmul.f32 %v72, %v67
    %v74 = vmul.f32 %v72, %v68
    %v75 = vmul.f32 %v72, %v69
    %v76 = vmul.f32 %v72, %v70
    %s77 = sld [smem:[#allocation5 + $0x9]]
    %v78 = vstv %s77
    %v79 = vmul.f32 %v78, %v67
    %v80 = vmul.f32 %v78, %v68
    %v81 = vmul.f32 %v78, %v69
    %v82 = vmul.f32 %v78, %v70
    %s83 = sld [smem:[#allocation5 + $0x12]]
    %v84 = vstv %s83
    %v85 = vmul.f32 %v84, %v67
    %v86 = vmul.f32 %v84, %v68
    %v87 = vmul.f32 %v84, %v69
    %v88 = vmul.f32 %v84, %v70
    %s89 = sld [smem:[#allocation5 + $0x1b]]
    %v90 = vstv %s89
    %v91 = vmul.f32 %v90, %v67
    %v92 = vmul.f32 %v90, %v68
    %v93 = vmul.f32 %v90, %v69
    %v94 = vmul.f32 %v90, %v70
    %s95 = sld [smem:[#allocation5 + $0x1]]
    %v96 = vstv %s95
    %v97 = vmul.f32 %v96, %v67
    %v98 = vmul.f32 %v96, %v68
    %v99 = vmul.f32 %v96, %v69
    %v100 = vmul.f32 %v96, %v70
    %105 = vrot.lane.b32.xlu0 %v97, 127
    %v106 = vpop.permute.xlu0 %105
    %107 = vrot.lane.b32.xlu0 %v98, 127
    %v108 = vpop.permute.xlu0 %107
    %109 = vrot.lane.b32.xlu0 %v99, 127
    %v110 = vpop.permute.xlu0 %109
    %111 = vrot.lane.b32.xlu0 %v100, 127
    %v112 = vpop.permute.xlu0 %111
    %v117 = vadd.f32 %v73, %v106
    %v118 = vadd.f32 %v74, %v108
    %v119 = vadd.f32 %v75, %v110
    %v120 = vadd.f32 %v76, %v112
    %s121 = sld [smem:[#allocation5 + $0xa]]
    %v122 = vstv %s121
    %v123 = vmul.f32 %v122, %v67
    %v124 = vmul.f32 %v122, %v68
    %v125 = vmul.f32 %v122, %v69
    %v126 = vmul.f32 %v122, %v70
    %131 = vrot.lane.b32.xlu0 %v123, 127
    %v132 = vpop.permute.xlu0 %131
    %133 = vrot.lane.b32.xlu0 %v124, 127
    %v134 = vpop.permute.xlu0 %133
    %135 = vrot.lane.b32.xlu0 %v125, 127
    %v136 = vpop.permute.xlu0 %135
    %137 = vrot.lane.b32.xlu0 %v126, 127
    %v138 = vpop.permute.xlu0 %137
    %v143 = vadd.f32 %v79, %v132
    %v144 = vadd.f32 %v80, %v134
    %v145 = vadd.f32 %v81, %v136
    %v146 = vadd.f32 %v82, %v138
    %s147 = sld [smem:[#allocation5 + $0x13]]
    %v148 = vstv %s147
    %v149 = vmul.f32 %v148, %v67
    %v150 = vmul.f32 %v148, %v68
    %v151 = vmul.f32 %v148, %v69
    %v152 = vmul.f32 %v148, %v70
    %157 = vrot.lane.b32.xlu0 %v149, 127
    %v158 = vpop.permute.xlu0 %157
    %159 = vrot.lane.b32.xlu0 %v150, 127
    %v160 = vpop.permute.xlu0 %159
    %161 = vrot.lane.b32.xlu0 %v151, 127
    %v162 = vpop.permute.xlu0 %161
    %163 = vrot.lane.b32.xlu0 %v152, 127
    %v164 = vpop.permute.xlu0 %163
    %v169 = vadd.f32 %v85, %v158
    %v170 = vadd.f32 %v86, %v160
    %v171 = vadd.f32 %v87, %v162
    %v172 = vadd.f32 %v88, %v164
    %s173 = sld [smem:[#allocation5 + $0x1c]]
    %v174 = vstv %s173
    %v175 = vmul.f32 %v174, %v67
    %v176 = vmul.f32 %v174, %v68
    %v177 = vmul.f32 %v174, %v69
    %v178 = vmul.f32 %v174, %v70
    %183 = vrot.lane.b32.xlu0 %v175, 127
    %v184 = vpop.permute.xlu0 %183
    %185 = vrot.lane.b32.xlu0 %v176, 127
    %v186 = vpop.permute.xlu0 %185
    %187 = vrot.lane.b32.xlu0 %v177, 127
    %v188 = vpop.permute.xlu0 %187
    %189 = vrot.lane.b32.xlu0 %v178, 127
    %v190 = vpop.permute.xlu0 %189
    %v195 = vadd.f32 %v91, %v184
    %v196 = vadd.f32 %v92, %v186
    %v197 = vadd.f32 %v93, %v188
    %v198 = vadd.f32 %v94, %v190
    %s199 = sld [smem:[#allocation5 + $0x2]]
    %v200 = vstv %s199
    %v201 = vmul.f32 %v200, %v67
    %v202 = vmul.f32 %v200, %v68
    %v203 = vmul.f32 %v200, %v69
    %v204 = vmul.f32 %v200, %v70
    %209 = vrot.lane.b32.xlu0 %v201, 126
    %v210 = vpop.permute.xlu0 %209
    %211 = vrot.lane.b32.xlu0 %v202, 126
    %v212 = vpop.permute.xlu0 %211
    %213 = vrot.lane.b32.xlu0 %v203, 126
    %v214 = vpop.permute.xlu0 %213
    %215 = vrot.lane.b32.xlu0 %v204, 126
    %v216 = vpop.permute.xlu0 %215
    %v221 = vadd.f32 %v117, %v210
    %v222 = vadd.f32 %v118, %v212
    %v223 = vadd.f32 %v119, %v214
    %v224 = vadd.f32 %v120, %v216
    %s225 = sld [smem:[#allocation5 + $0xb]]
    %v226 = vstv %s225
    %v227 = vmul.f32 %v226, %v67
    %v228 = vmul.f32 %v226, %v68
    %v229 = vmul.f32 %v226, %v69
    %v230 = vmul.f32 %v226, %v70
    %235 = vrot.lane.b32.xlu0 %v227, 126
    %v236 = vpop.permute.xlu0 %235
    %237 = vrot.lane.b32.xlu0 %v228, 126
    %v238 = vpop.permute.xlu0 %237
    %239 = vrot.lane.b32.xlu0 %v229, 126
    %v240 = vpop.permute.xlu0 %239
    %241 = vrot.lane.b32.xlu0 %v230, 126
    %v242 = vpop.permute.xlu0 %241
    %v247 = vadd.f32 %v143, %v236
    %v248 = vadd.f32 %v144, %v238
    %v249 = vadd.f32 %v145, %v240
    %v250 = vadd.f32 %v146, %v242
    %s251 = sld [smem:[#allocation5 + $0x14]]
    %v252 = vstv %s251
    %v253 = vmul.f32 %v252, %v67
    %v254 = vmul.f32 %v252, %v68
    %v255 = vmul.f32 %v252, %v69
    %v256 = vmul.f32 %v252, %v70
    %261 = vrot.lane.b32.xlu0 %v253, 126
    %v262 = vpop.permute.xlu0 %261
    %263 = vrot.lane.b32.xlu0 %v254, 126
    %v264 = vpop.permute.xlu0 %263
    %265 = vrot.lane.b32.xlu0 %v255, 126
    %v266 = vpop.permute.xlu0 %265
    %267 = vrot.lane.b32.xlu0 %v256, 126
    %v268 = vpop.permute.xlu0 %267
    %v273 = vadd.f32 %v169, %v262
    %v274 = vadd.f32 %v170, %v264
    %v275 = vadd.f32 %v171, %v266
    %v276 = vadd.f32 %v172, %v268
    %s277 = sld [smem:[#allocation5 + $0x1d]]
    %v278 = vstv %s277
    %v279 = vmul.f32 %v278, %v67
    %v280 = vmul.f32 %v278, %v68
    %v281 = vmul.f32 %v278, %v69
    %v282 = vmul.f32 %v278, %v70
    %287 = vrot.lane.b32.xlu0 %v279, 126
    %v288 = vpop.permute.xlu0 %287
    %289 = vrot.lane.b32.xlu0 %v280, 126
    %v290 = vpop.permute.xlu0 %289
    %291 = vrot.lane.b32.xlu0 %v281, 126
    %v292 = vpop.permute.xlu0 %291
    %293 = vrot.lane.b32.xlu0 %v282, 126
    %v294 = vpop.permute.xlu0 %293
    %v299 = vadd.f32 %v195, %v288
    %v300 = vadd.f32 %v196, %v290
    %v301 = vadd.f32 %v197, %v292
    %v302 = vadd.f32 %v198, %v294
    %s303 = sld [smem:[#allocation5 + $0x3]]
    %v304 = vstv %s303
    %v305 = vmul.f32 %v304, %v67
    %v306 = vmul.f32 %v304, %v68
    %v307 = vmul.f32 %v304, %v69
    %v308 = vmul.f32 %v304, %v70
    %vm313 = vcmask 1046528
    %v314 = vrot.slane %v305, 1
    %v315 = vrot.slane %v306, 1
    %v316 = vsel %vm313, %v314, %v315
    %v317 = vrot.slane %v307, 1
    %v318 = vrot.slane %v308, 1
    %v319 = vsel %vm313, %v317, %v318
    %v324 = vadd.f32 %v221, %v316
    %v325 = vadd.f32 %v222, %v315
    %v326 = vadd.f32 %v223, %v319
    %v327 = vadd.f32 %v224, %v318
    %s328 = sld [smem:[#allocation5 + $0xc]]
    %v329 = vstv %s328
    %v330 = vmul.f32 %v329, %v67
    %v331 = vmul.f32 %v329, %v68
    %v332 = vmul.f32 %v329, %v69
    %v333 = vmul.f32 %v329, %v70
    %v338 = vrot.slane %v330, 1
    %v339 = vrot.slane %v331, 1
    %v340 = vsel %vm313, %v338, %v339
    %v341 = vrot.slane %v332, 1
    %v342 = vrot.slane %v333, 1
    %v343 = vsel %vm313, %v341, %v342
    %v348 = vadd.f32 %v247, %v340
    %v349 = vadd.f32 %v248, %v339
    %v350 = vadd.f32 %v249, %v343
    %v351 = vadd.f32 %v250, %v342
    %s352 = sld [smem:[#allocation5 + $0x15]]
    %v353 = vstv %s352
    %v354 = vmul.f32 %v353, %v67
    %v355 = vmul.f32 %v353, %v68
    %v356 = vmul.f32 %v353, %v69
    %v357 = vmul.f32 %v353, %v70
    %v362 = vrot.slane %v354, 1
    %v363 = vrot.slane %v355, 1
    %v364 = vsel %vm313, %v362, %v363
    %v365 = vrot.slane %v356, 1
    %v366 = vrot.slane %v357, 1
    %v367 = vsel %vm313, %v365, %v366
    %v372 = vadd.f32 %v273, %v364
    %v373 = vadd.f32 %v274, %v363
    %v374 = vadd.f32 %v275, %v367
    %v375 = vadd.f32 %v276, %v366
    %s376 = sld [smem:[#allocation5 + $0x1e]]
    %v377 = vstv %s376
    %v378 = vmul.f32 %v377, %v67
    %v379 = vmul.f32 %v377, %v68
    %v380 = vmul.f32 %v377, %v69
    %v381 = vmul.f32 %v377, %v70
    %v386 = vrot.slane %v378, 1
    %v387 = vrot.slane %v379, 1
    %v388 = vsel %vm313, %v386, %v387
    %v389 = vrot.slane %v380, 1
    %v390 = vrot.slane %v381, 1
    %v391 = vsel %vm313, %v389, %v390
    %v396 = vadd.f32 %v299, %v388
    %v397 = vadd.f32 %v300, %v387
    %v398 = vadd.f32 %v301, %v391
    %v399 = vadd.f32 %v302, %v390
    %s400 = sld [smem:[#allocation5 + $0x4]]
    %v401 = vstv %s400
    %v402 = vmul.f32 %v401, %v67
    %v403 = vmul.f32 %v401, %v68
    %v404 = vmul.f32 %v401, %v69
    %v405 = vmul.f32 %v401, %v70
    %v410 = vrot.slane %v402, 1
    %v411 = vrot.slane %v403, 1
    %v412 = vsel %vm313, %v410, %v411
    %v413 = vrot.slane %v404, 1
    %v414 = vrot.slane %v405, 1
    %v415 = vsel %vm313, %v413, %v414
    %416 = vrot.lane.b32.xlu0 %v412, 127
    %v417 = vpop.permute.xlu0 %416
    %418 = vrot.lane.b32.xlu0 %v411, 127
    %v419 = vpop.permute.xlu0 %418
    %420 = vrot.lane.b32.xlu0 %v415, 127
    %v421 = vpop.permute.xlu0 %420
    %422 = vrot.lane.b32.xlu0 %v414, 127
    %v423 = vpop.permute.xlu0 %422
    %v428 = vadd.f32 %v324, %v417
    %v429 = vadd.f32 %v325, %v419
    %v430 = vadd.f32 %v326, %v421
    %v431 = vadd.f32 %v327, %v423
    %s432 = sld [smem:[#allocation5 + $0xd]]
    %v433 = vstv %s432
    %v434 = vmul.f32 %v433, %v67
    %v435 = vmul.f32 %v433, %v68
    %v436 = vmul.f32 %v433, %v69
    %v437 = vmul.f32 %v433, %v70
    %v442 = vrot.slane %v434, 1
    %v443 = vrot.slane %v435, 1
    %v444 = vsel %vm313, %v442, %v443
    %v445 = vrot.slane %v436, 1
    %v446 = vrot.slane %v437, 1
    %v447 = vsel %vm313, %v445, %v446
    %448 = vrot.lane.b32.xlu0 %v444, 127
    %v449 = vpop.permute.xlu0 %448
    %450 = vrot.lane.b32.xlu0 %v443, 127
    %v451 = vpop.permute.xlu0 %450
    %452 = vrot.lane.b32.xlu0 %v447, 127
    %v453 = vpop.permute.xlu0 %452
    %454 = vrot.lane.b32.xlu0 %v446, 127
    %v455 = vpop.permute.xlu0 %454
    %v460 = vadd.f32 %v348, %v449
    %v461 = vadd.f32 %v349, %v451
    %v462 = vadd.f32 %v350, %v453
    %v463 = vadd.f32 %v351, %v455
    %s464 = sld [smem:[#allocation5 + $0x16]]
    %v465 = vstv %s464
    %v466 = vmul.f32 %v465, %v67
    %v467 = vmul.f32 %v465, %v68
    %v468 = vmul.f32 %v465, %v69
    %v469 = vmul.f32 %v465, %v70
    %v474 = vrot.slane %v466, 1
    %v475 = vrot.slane %v467, 1
    %v476 = vsel %vm313, %v474, %v475
    %v477 = vrot.slane %v468, 1
    %v478 = vrot.slane %v469, 1
    %v479 = vsel %vm313, %v477, %v478
    %480 = vrot.lane.b32.xlu0 %v476, 127
    %v481 = vpop.permute.xlu0 %480
    %482 = vrot.lane.b32.xlu0 %v475, 127
    %v483 = vpop.permute.xlu0 %482
    %484 = vrot.lane.b32.xlu0 %v479, 127
    %v485 = vpop.permute.xlu0 %484
    %486 = vrot.lane.b32.xlu0 %v478, 127
    %v487 = vpop.permute.xlu0 %486
    %v492 = vadd.f32 %v372, %v481
    %v493 = vadd.f32 %v373, %v483
    %v494 = vadd.f32 %v374, %v485
    %v495 = vadd.f32 %v375, %v487
    %s496 = sld [smem:[#allocation5 + $0x1f]]
    %v497 = vstv %s496
    %v498 = vmul.f32 %v497, %v67
    %v499 = vmul.f32 %v497, %v68
    %v500 = vmul.f32 %v497, %v69
    %v501 = vmul.f32 %v497, %v70
    %v506 = vrot.slane %v498, 1
    %v507 = vrot.slane %v499, 1
    %v508 = vsel %vm313, %v506, %v507
    %v509 = vrot.slane %v500, 1
    %v510 = vrot.slane %v501, 1
    %v511 = vsel %vm313, %v509, %v510
    %512 = vrot.lane.b32.xlu0 %v508, 127
    %v513 = vpop.permute.xlu0 %512
    %514 = vrot.lane.b32.xlu0 %v507, 127
    %v515 = vpop.permute.xlu0 %514
    %516 = vrot.lane.b32.xlu0 %v511, 127
    %v517 = vpop.permute.xlu0 %516
    %518 = vrot.lane.b32.xlu0 %v510, 127
    %v519 = vpop.permute.xlu0 %518
    %v524 = vadd.f32 %v396, %v513
    %v525 = vadd.f32 %v397, %v515
    %v526 = vadd.f32 %v398, %v517
    %v527 = vadd.f32 %v399, %v519
    %s528 = sld [smem:[#allocation5 + $0x5]]
    %v529 = vstv %s528
    %v530 = vmul.f32 %v529, %v67
    %v531 = vmul.f32 %v529, %v68
    %v532 = vmul.f32 %v529, %v69
    %v533 = vmul.f32 %v529, %v70
    %v538 = vrot.slane %v530, 1
    %v539 = vrot.slane %v531, 1
    %v540 = vsel %vm313, %v538, %v539
    %v541 = vrot.slane %v532, 1
    %v542 = vrot.slane %v533, 1
    %v543 = vsel %vm313, %v541, %v542
    %544 = vrot.lane.b32.xlu0 %v540, 126
    %v545 = vpop.permute.xlu0 %544
    %546 = vrot.lane.b32.xlu0 %v539, 126
    %v547 = vpop.permute.xlu0 %546
    %548 = vrot.lane.b32.xlu0 %v543, 126
    %v549 = vpop.permute.xlu0 %548
    %550 = vrot.lane.b32.xlu0 %v542, 126
    %v551 = vpop.permute.xlu0 %550
    %v556 = vadd.f32 %v428, %v545
    %v557 = vadd.f32 %v429, %v547
    %v558 = vadd.f32 %v430, %v549
    %v559 = vadd.f32 %v431, %v551
    %s560 = sld [smem:[#allocation5 + $0xe]]
    %v561 = vstv %s560
    %v562 = vmul.f32 %v561, %v67
    %v563 = vmul.f32 %v561, %v68
    %v564 = vmul.f32 %v561, %v69
    %v565 = vmul.f32 %v561, %v70
    %v570 = vrot.slane %v562, 1
    %v571 = vrot.slane %v563, 1
    %v572 = vsel %vm313, %v570, %v571
    %v573 = vrot.slane %v564, 1
    %v574 = vrot.slane %v565, 1
    %v575 = vsel %vm313, %v573, %v574
    %576 = vrot.lane.b32.xlu0 %v572, 126
    %v577 = vpop.permute.xlu0 %576
    %578 = vrot.lane.b32.xlu0 %v571, 126
    %v579 = vpop.permute.xlu0 %578
    %580 = vrot.lane.b32.xlu0 %v575, 126
    %v581 = vpop.permute.xlu0 %580
    %582 = vrot.lane.b32.xlu0 %v574, 126
    %v583 = vpop.permute.xlu0 %582
    %v588 = vadd.f32 %v460, %v577
    %v589 = vadd.f32 %v461, %v579
    %v590 = vadd.f32 %v462, %v581
    %v591 = vadd.f32 %v463, %v583
    %s592 = sld [smem:[#allocation5 + $0x17]]
    %v593 = vstv %s592
    %v594 = vmul.f32 %v593, %v67
    %v595 = vmul.f32 %v593, %v68
    %v596 = vmul.f32 %v593, %v69
    %v597 = vmul.f32 %v593, %v70
    %v602 = vrot.slane %v594, 1
    %v603 = vrot.slane %v595, 1
    %v604 = vsel %vm313, %v602, %v603
    %v605 = vrot.slane %v596, 1
    %v606 = vrot.slane %v597, 1
    %v607 = vsel %vm313, %v605, %v606
    %608 = vrot.lane.b32.xlu0 %v604, 126
    %v609 = vpop.permute.xlu0 %608
    %610 = vrot.lane.b32.xlu0 %v603, 126
    %v611 = vpop.permute.xlu0 %610
    %612 = vrot.lane.b32.xlu0 %v607, 126
    %v613 = vpop.permute.xlu0 %612
    %614 = vrot.lane.b32.xlu0 %v606, 126
    %v615 = vpop.permute.xlu0 %614
    %v620 = vadd.f32 %v492, %v609
    %v621 = vadd.f32 %v493, %v611
    %v622 = vadd.f32 %v494, %v613
    %v623 = vadd.f32 %v495, %v615
    %s624 = sld [smem:[#allocation5 + $0x20]]
    %v625 = vstv %s624
    %v626 = vmul.f32 %v625, %v67
    %v627 = vmul.f32 %v625, %v68
    %v628 = vmul.f32 %v625, %v69
    %v629 = vmul.f32 %v625, %v70
    %v634 = vrot.slane %v626, 1
    %v635 = vrot.slane %v627, 1
    %v636 = vsel %vm313, %v634, %v635
    %v637 = vrot.slane %v628, 1
    %v638 = vrot.slane %v629, 1
    %v639 = vsel %vm313, %v637, %v638
    %640 = vrot.lane.b32.xlu0 %v636, 126
    %v641 = vpop.permute.xlu0 %640
    %642 = vrot.lane.b32.xlu0 %v635, 126
    %v643 = vpop.permute.xlu0 %642
    %644 = vrot.lane.b32.xlu0 %v639, 126
    %v645 = vpop.permute.xlu0 %644
    %646 = vrot.lane.b32.xlu0 %v638, 126
    %v647 = vpop.permute.xlu0 %646
    %v652 = vadd.f32 %v524, %v641
    %v653 = vadd.f32 %v525, %v643
    %v654 = vadd.f32 %v526, %v645
    %v655 = vadd.f32 %v527, %v647
    %s656 = sld [smem:[#allocation5 + $0x6]]
    %v657 = vstv %s656
    %v658 = vmul.f32 %v657, %v67
    %v659 = vmul.f32 %v657, %v68
    %v660 = vmul.f32 %v657, %v69
    %v661 = vmul.f32 %v657, %v70
    %vm666 = vcmask 1045504
    %v667 = vrot.slane %v658, 2
    %v668 = vrot.slane %v659, 2
    %v669 = vsel %vm666, %v667, %v668
    %v670 = vrot.slane %v660, 2
    %v671 = vrot.slane %v661, 2
    %v672 = vsel %vm666, %v670, %v671
    %v677 = vadd.f32 %v556, %v669
    %v678 = vadd.f32 %v557, %v668
    %v679 = vadd.f32 %v558, %v672
    %v680 = vadd.f32 %v559, %v671
    %s681 = sld [smem:[#allocation5 + $0xf]]
    %v682 = vstv %s681
    %v683 = vmul.f32 %v682, %v67
    %v684 = vmul.f32 %v682, %v68
    %v685 = vmul.f32 %v682, %v69
    %v686 = vmul.f32 %v682, %v70
    %v691 = vrot.slane %v683, 2
    %v692 = vrot.slane %v684, 2
    %v693 = vsel %vm666, %v691, %v692
    %v694 = vrot.slane %v685, 2
    %v695 = vrot.slane %v686, 2
    %v696 = vsel %vm666, %v694, %v695
    %v701 = vadd.f32 %v588, %v693
    %v702 = vadd.f32 %v589, %v692
    %v703 = vadd.f32 %v590, %v696
    %v704 = vadd.f32 %v591, %v695
    %s705 = sld [smem:[#allocation5 + $0x18]]
    %v706 = vstv %s705
    %v707 = vmul.f32 %v706, %v67
    %v708 = vmul.f32 %v706, %v68
    %v709 = vmul.f32 %v706, %v69
    %v710 = vmul.f32 %v706, %v70
    %v715 = vrot.slane %v707, 2
    %v716 = vrot.slane %v708, 2
    %v717 = vsel %vm666, %v715, %v716
    %v718 = vrot.slane %v709, 2
    %v719 = vrot.slane %v710, 2
    %v720 = vsel %vm666, %v718, %v719
    %v725 = vadd.f32 %v620, %v717
    %v726 = vadd.f32 %v621, %v716
    %v727 = vadd.f32 %v622, %v720
    %v728 = vadd.f32 %v623, %v719
    %s729 = sld [smem:[#allocation5 + $0x21]]
    %v730 = vstv %s729
    %v731 = vmul.f32 %v730, %v67
    %v732 = vmul.f32 %v730, %v68
    %v733 = vmul.f32 %v730, %v69
    %v734 = vmul.f32 %v730, %v70
    %v739 = vrot.slane %v731, 2
    %v740 = vrot.slane %v732, 2
    %v741 = vsel %vm666, %v739, %v740
    %v742 = vrot.slane %v733, 2
    %v743 = vrot.slane %v734, 2
    %v744 = vsel %vm666, %v742, %v743
    %v749 = vadd.f32 %v652, %v741
    %v750 = vadd.f32 %v653, %v740
    %v751 = vadd.f32 %v654, %v744
    %v752 = vadd.f32 %v655, %v743
    %s753 = sld [smem:[#allocation5 + $0x7]]
    %v754 = vstv %s753
    %v755 = vmul.f32 %v754, %v67
    %v756 = vmul.f32 %v754, %v68
    %v757 = vmul.f32 %v754, %v69
    %v758 = vmul.f32 %v754, %v70
    %v763 = vrot.slane %v755, 2
    %v764 = vrot.slane %v756, 2
    %v765 = vsel %vm666, %v763, %v764
    %v766 = vrot.slane %v757, 2
    %v767 = vrot.slane %v758, 2
    %v768 = vsel %vm666, %v766, %v767
    %769 = vrot.lane.b32.xlu0 %v765, 127
    %v770 = vpop.permute.xlu0 %769
    %771 = vrot.lane.b32.xlu0 %v764, 127
    %v772 = vpop.permute.xlu0 %771
    %773 = vrot.lane.b32.xlu0 %v768, 127
    %v774 = vpop.permute.xlu0 %773
    %775 = vrot.lane.b32.xlu0 %v767, 127
    %v776 = vpop.permute.xlu0 %775
    %v781 = vadd.f32 %v677, %v770
    %v782 = vadd.f32 %v678, %v772
    %v783 = vadd.f32 %v679, %v774
    %v784 = vadd.f32 %v680, %v776
    %s785 = sld [smem:[#allocation5 + $0x10]]
    %v786 = vstv %s785
    %v787 = vmul.f32 %v786, %v67
    %v788 = vmul.f32 %v786, %v68
    %v789 = vmul.f32 %v786, %v69
    %v790 = vmul.f32 %v786, %v70
    %v795 = vrot.slane %v787, 2
    %v796 = vrot.slane %v788, 2
    %v797 = vsel %vm666, %v795, %v796
    %v798 = vrot.slane %v789, 2
    %v799 = vrot.slane %v790, 2
    %v800 = vsel %vm666, %v798, %v799
    %801 = vrot.lane.b32.xlu0 %v797, 127
    %v802 = vpop.permute.xlu0 %801
    %803 = vrot.lane.b32.xlu0 %v796, 127
    %v804 = vpop.permute.xlu0 %803
    %805 = vrot.lane.b32.xlu0 %v800, 127
    %v806 = vpop.permute.xlu0 %805
    %807 = vrot.lane.b32.xlu0 %v799, 127
    %v808 = vpop.permute.xlu0 %807
    %v813 = vadd.f32 %v701, %v802
    %v814 = vadd.f32 %v702, %v804
    %v815 = vadd.f32 %v703, %v806
    %v816 = vadd.f32 %v704, %v808
    %s817 = sld [smem:[#allocation5 + $0x19]]
    %v818 = vstv %s817
    %v819 = vmul.f32 %v818, %v67
    %v820 = vmul.f32 %v818, %v68
    %v821 = vmul.f32 %v818, %v69
    %v822 = vmul.f32 %v818, %v70
    %v827 = vrot.slane %v819, 2
    %v828 = vrot.slane %v820, 2
    %v829 = vsel %vm666, %v827, %v828
    %v830 = vrot.slane %v821, 2
    %v831 = vrot.slane %v822, 2
    %v832 = vsel %vm666, %v830, %v831
    %833 = vrot.lane.b32.xlu0 %v829, 127
    %v834 = vpop.permute.xlu0 %833
    %835 = vrot.lane.b32.xlu0 %v828, 127
    %v836 = vpop.permute.xlu0 %835
    %837 = vrot.lane.b32.xlu0 %v832, 127
    %v838 = vpop.permute.xlu0 %837
    %839 = vrot.lane.b32.xlu0 %v831, 127
    %v840 = vpop.permute.xlu0 %839
    %v845 = vadd.f32 %v725, %v834
    %v846 = vadd.f32 %v726, %v836
    %v847 = vadd.f32 %v727, %v838
    %v848 = vadd.f32 %v728, %v840
    %s849 = sld [smem:[#allocation5 + $0x22]]
    %v850 = vstv %s849
    %v851 = vmul.f32 %v850, %v67
    %v852 = vmul.f32 %v850, %v68
    %v853 = vmul.f32 %v850, %v69
    %v854 = vmul.f32 %v850, %v70
    %v859 = vrot.slane %v851, 2
    %v860 = vrot.slane %v852, 2
    %v861 = vsel %vm666, %v859, %v860
    %v862 = vrot.slane %v853, 2
    %v863 = vrot.slane %v854, 2
    %v864 = vsel %vm666, %v862, %v863
    %865 = vrot.lane.b32.xlu0 %v861, 127
    %v866 = vpop.permute.xlu0 %865
    %867 = vrot.lane.b32.xlu0 %v860, 127
    %v868 = vpop.permute.xlu0 %867
    %869 = vrot.lane.b32.xlu0 %v864, 127
    %v870 = vpop.permute.xlu0 %869
    %871 = vrot.lane.b32.xlu0 %v863, 127
    %v872 = vpop.permute.xlu0 %871
    %v877 = vadd.f32 %v749, %v866
    %v878 = vadd.f32 %v750, %v868
    %v879 = vadd.f32 %v751, %v870
    %v880 = vadd.f32 %v752, %v872
    %s881 = sld [smem:[#allocation5 + $0x8]]
    %v882 = vstv %s881
    %v883 = vmul.f32 %v882, %v67
    %v884 = vmul.f32 %v882, %v68
    %v885 = vmul.f32 %v882, %v69
    %v886 = vmul.f32 %v882, %v70
    %v891 = vrot.slane %v883, 2
    %v892 = vrot.slane %v884, 2
    %v893 = vsel %vm666, %v891, %v892
    %v894 = vrot.slane %v885, 2
    %v895 = vrot.slane %v886, 2
    %v896 = vsel %vm666, %v894, %v895
    %897 = vrot.lane.b32.xlu0 %v893, 126
    %v898 = vpop.permute.xlu0 %897
    %899 = vrot.lane.b32.xlu0 %v892, 126
    %v900 = vpop.permute.xlu0 %899
    %901 = vrot.lane.b32.xlu0 %v896, 126
    %v902 = vpop.permute.xlu0 %901
    %903 = vrot.lane.b32.xlu0 %v895, 126
    %v904 = vpop.permute.xlu0 %903
    %v909 = vadd.f32 %v781, %v898
    %v910 = vadd.f32 %v782, %v900
    %v911 = vadd.f32 %v783, %v902
    %v912 = vadd.f32 %v784, %v904
    %s913 = sld [smem:[#allocation5 + $0x11]]
    %v914 = vstv %s913
    %v915 = vmul.f32 %v914, %v67
    %v916 = vmul.f32 %v914, %v68
    %v917 = vmul.f32 %v914, %v69
    %v918 = vmul.f32 %v914, %v70
    %v923 = vrot.slane %v915, 2
    %v924 = vrot.slane %v916, 2
    %v925 = vsel %vm666, %v923, %v924
    %v926 = vrot.slane %v917, 2
    %v927 = vrot.slane %v918, 2
    %v928 = vsel %vm666, %v926, %v927
    %929 = vrot.lane.b32.xlu0 %v925, 126
    %v930 = vpop.permute.xlu0 %929
    %931 = vrot.lane.b32.xlu0 %v924, 126
    %v932 = vpop.permute.xlu0 %931
    %933 = vrot.lane.b32.xlu0 %v928, 126
    %v934 = vpop.permute.xlu0 %933
    %935 = vrot.lane.b32.xlu0 %v927, 126
    %v936 = vpop.permute.xlu0 %935
    %v941 = vadd.f32 %v813, %v930
    %v942 = vadd.f32 %v814, %v932
    %v943 = vadd.f32 %v815, %v934
    %v944 = vadd.f32 %v816, %v936
    %s945 = sld [smem:[#allocation5 + $0x1a]]
    %v946 = vstv %s945
    %v947 = vmul.f32 %v946, %v67
    %v948 = vmul.f32 %v946, %v68
    %v949 = vmul.f32 %v946, %v69
    %v950 = vmul.f32 %v946, %v70
    %v955 = vrot.slane %v947, 2
    %v956 = vrot.slane %v948, 2
    %v957 = vsel %vm666, %v955, %v956
    %v958 = vrot.slane %v949, 2
    %v959 = vrot.slane %v950, 2
    %v960 = vsel %vm666, %v958, %v959
    %961 = vrot.lane.b32.xlu0 %v957, 126
    %v962 = vpop.permute.xlu0 %961
    %963 = vrot.lane.b32.xlu0 %v956, 126
    %v964 = vpop.permute.xlu0 %963
    %965 = vrot.lane.b32.xlu0 %v960, 126
    %v966 = vpop.permute.xlu0 %965
    %967 = vrot.lane.b32.xlu0 %v959, 126
    %v968 = vpop.permute.xlu0 %967
    %v973 = vadd.f32 %v845, %v962
    %v974 = vadd.f32 %v846, %v964
    %v975 = vadd.f32 %v847, %v966
    %v976 = vadd.f32 %v848, %v968
    %s977 = sld [smem:[#allocation5 + $0x23]]
    %v978 = vstv %s977
    %v979 = vmul.f32 %v978, %v67
    %v980 = vmul.f32 %v978, %v68
    %v981 = vmul.f32 %v978, %v69
    %v982 = vmul.f32 %v978, %v70
    %v987 = vrot.slane %v979, 2
    %v988 = vrot.slane %v980, 2
    %v989 = vsel %vm666, %v987, %v988
    %v990 = vrot.slane %v981, 2
    %v991 = vrot.slane %v982, 2
    %v992 = vsel %vm666, %v990, %v991
    %993 = vrot.lane.b32.xlu0 %v989, 126
    %v994 = vpop.permute.xlu0 %993
    %995 = vrot.lane.b32.xlu0 %v988, 126
    %v996 = vpop.permute.xlu0 %995
    %997 = vrot.lane.b32.xlu0 %v992, 126
    %v998 = vpop.permute.xlu0 %997
    %999 = vrot.lane.b32.xlu0 %v991, 126
    %v1000 = vpop.permute.xlu0 %999
    %v1005 = vadd.f32 %v877, %v994
    %v1006 = vadd.f32 %v878, %v996
    %v1007 = vadd.f32 %v879, %v998
    %v1008 = vadd.f32 %v880, %v1000
    %v1009 = vmul.f32 %v909, %v909
    %v1010 = vmul.f32 %v910, %v910
    %v1011 = vmul.f32 %v911, %v911
    %v1012 = vmul.f32 %v912, %v912
    %v1013 = vmul.f32 %v941, %v941
    %v1014 = vmul.f32 %v942, %v942
    %v1015 = vmul.f32 %v943, %v943
    %v1016 = vmul.f32 %v944, %v944
    %v1017 = vmul.f32 %v973, %v973
    %v1018 = vmul.f32 %v974, %v974
    %v1019 = vmul.f32 %v975, %v975
    %v1020 = vmul.f32 %v976, %v976
    %v1021 = vmul.f32 %v1005, %v1005
    %v1022 = vmul.f32 %v1006, %v1006
    %v1023 = vmul.f32 %v1007, %v1007
    %v1024 = vmul.f32 %v1008, %v1008
    %vm1025 = vcmask 113664
    %v1026 = vsel %vm1025, %v909, 0.0
    %1027 = vadd.xlane.f32.xlu0 %v1026
    %v1028 = vpop.xlane.xlu0 %1027
    %vm1029 = vcmask 111616
    %v1030 = vsel %vm1029, %v910, 0.0
    %1031 = vadd.xlane.f32.xlu0 %v1030
    %v1032 = vpop.xlane.xlu0 %1031
    %v1033 = vsel %vm1025, %v911, 0.0
    %1034 = vadd.xlane.f32.xlu0 %v1033
    %v1035 = vpop.xlane.xlu0 %1034
    %v1036 = vsel %vm1029, %v912, 0.0
    %1037 = vadd.xlane.f32.xlu0 %v1036
    %v1038 = vpop.xlane.xlu0 %1037
    %v1039 = vsel %vm1025, %v941, 0.0
    %1040 = vadd.xlane.f32.xlu0 %v1039
    %v1041 = vpop.xlane.xlu0 %1040
    %v1042 = vsel %vm1029, %v942, 0.0
    %1043 = vadd.xlane.f32.xlu0 %v1042
    %v1044 = vpop.xlane.xlu0 %1043
    %v1045 = vsel %vm1025, %v943, 0.0
    %1046 = vadd.xlane.f32.xlu0 %v1045
    %v1047 = vpop.xlane.xlu0 %1046
    %v1048 = vsel %vm1029, %v944, 0.0
    %1049 = vadd.xlane.f32.xlu0 %v1048
    %v1050 = vpop.xlane.xlu0 %1049
    %v1051 = vsel %vm1025, %v973, 0.0
    %1052 = vadd.xlane.f32.xlu0 %v1051
    %v1053 = vpop.xlane.xlu0 %1052
    %v1054 = vsel %vm1029, %v974, 0.0
    %1055 = vadd.xlane.f32.xlu0 %v1054
    %v1056 = vpop.xlane.xlu0 %1055
    %v1057 = vsel %vm1025, %v975, 0.0
    %1058 = vadd.xlane.f32.xlu0 %v1057
    %v1059 = vpop.xlane.xlu0 %1058
    %v1060 = vsel %vm1029, %v976, 0.0
    %1061 = vadd.xlane.f32.xlu0 %v1060
    %v1062 = vpop.xlane.xlu0 %1061
    %v1063 = vsel %vm1025, %v1005, 0.0
    %1064 = vadd.xlane.f32.xlu0 %v1063
    %v1065 = vpop.xlane.xlu0 %1064
    %v1066 = vsel %vm1029, %v1006, 0.0
    %1067 = vadd.xlane.f32.xlu0 %v1066
    %v1068 = vpop.xlane.xlu0 %1067
    %v1069 = vsel %vm1025, %v1007, 0.0
    %1070 = vadd.xlane.f32.xlu0 %v1069
    %v1071 = vpop.xlane.xlu0 %1070
    %v1072 = vsel %vm1029, %v1008, 0.0
    %1073 = vadd.xlane.f32.xlu0 %v1072
    %v1074 = vpop.xlane.xlu0 %1073
    %v1075 = vsel %vm1025, %v1009, 0.0
    %1076 = vadd.xlane.f32.xlu0 %v1075
    %v1077 = vpop.xlane.xlu0 %1076
    %v1078 = vsel %vm1029, %v1010, 0.0
    %1079 = vadd.xlane.f32.xlu0 %v1078
    %v1080 = vpop.xlane.xlu0 %1079
    %v1081 = vsel %vm1025, %v1011, 0.0
    %1082 = vadd.xlane.f32.xlu0 %v1081
    %v1083 = vpop.xlane.xlu0 %1082
    %v1084 = vsel %vm1029, %v1012, 0.0
    %1085 = vadd.xlane.f32.xlu0 %v1084
    %v1086 = vpop.xlane.xlu0 %1085
    %v1087 = vsel %vm1025, %v1013, 0.0
    %1088 = vadd.xlane.f32.xlu0 %v1087
    %v1089 = vpop.xlane.xlu0 %1088
    %v1090 = vsel %vm1029, %v1014, 0.0
    %1091 = vadd.xlane.f32.xlu0 %v1090
    %v1092 = vpop.xlane.xlu0 %1091
    %v1093 = vsel %vm1025, %v1015, 0.0
    %1094 = vadd.xlane.f32.xlu0 %v1093
    %v1095 = vpop.xlane.xlu0 %1094
    %v1096 = vsel %vm1029, %v1016, 0.0
    %1097 = vadd.xlane.f32.xlu0 %v1096
    %v1098 = vpop.xlane.xlu0 %1097
    %v1099 = vsel %vm1025, %v1017, 0.0
    %1100 = vadd.xlane.f32.xlu0 %v1099
    %v1101 = vpop.xlane.xlu0 %1100
    %v1102 = vsel %vm1029, %v1018, 0.0
    %1103 = vadd.xlane.f32.xlu0 %v1102
    %v1104 = vpop.xlane.xlu0 %1103
    %v1105 = vsel %vm1025, %v1019, 0.0
    %1106 = vadd.xlane.f32.xlu0 %v1105
    %v1107 = vpop.xlane.xlu0 %1106
    %v1108 = vsel %vm1029, %v1020, 0.0
    %1109 = vadd.xlane.f32.xlu0 %v1108
    %v1110 = vpop.xlane.xlu0 %1109
    %v1111 = vsel %vm1025, %v1021, 0.0
    %1112 = vadd.xlane.f32.xlu0 %v1111
    %v1113 = vpop.xlane.xlu0 %1112
    %v1114 = vsel %vm1029, %v1022, 0.0
    %1115 = vadd.xlane.f32.xlu0 %v1114
    %v1116 = vpop.xlane.xlu0 %1115
    %v1117 = vsel %vm1025, %v1023, 0.0
    %1118 = vadd.xlane.f32.xlu0 %v1117
    %v1119 = vpop.xlane.xlu0 %1118
    %v1120 = vsel %vm1029, %v1024, 0.0
    %1121 = vadd.xlane.f32.xlu0 %v1120
    %v1122 = vpop.xlane.xlu0 %1121
    %vm1123 = vcmask 7168
    %v1124 = vsel %vm1123, %v1028, 0.0
    %vm1125 = vcmask 5120
    %v1126 = vsel %vm1125, %v1032, 0.0
    %v1127 = vadd.f32 %v1124, %v1126
    %v1128 = vsel %vm1123, %v1035, 0.0
    %v1129 = vadd.f32 %v1127, %v1128
    %v1130 = vsel %vm1125, %v1038, 0.0
    %v1131 = vadd.f32 %v1129, %v1130
    %1132 = vadd.xlane.f32.xlu0 %v1131
    %v1133 = vpop.xlane.xlu0 %1132
    %v1134 = vrot.slane %v1133, 4
    %v1135 = vadd.f32 %v1133, %v1134
    %v1136 = vrot.slane %v1135, 2
    %v1137 = vadd.f32 %v1135, %v1136
    %v1138 = vrot.slane %v1137, 1
    %v1139 = vadd.f32 %v1137, %v1138
    %s1140 = vtos %v1139
    %v1141 = vsel %vm1123, %v1077, 0.0
    %v1142 = vsel %vm1125, %v1080, 0.0
    %v1143 = vadd.f32 %v1141, %v1142
    %v1144 = vsel %vm1123, %v1083, 0.0
    %v1145 = vadd.f32 %v1143, %v1144
    %v1146 = vsel %vm1125, %v1086, 0.0
    %v1147 = vadd.f32 %v1145, %v1146
    %1148 = vadd.xlane.f32.xlu0 %v1147
    %v1149 = vpop.xlane.xlu0 %1148
    %v1150 = vrot.slane %v1149, 4
    %v1151 = vadd.f32 %v1149, %v1150
    %v1152 = vrot.slane %v1151, 2
    %v1153 = vadd.f32 %v1151, %v1152
    %v1154 = vrot.slane %v1153, 1
    %v1155 = vadd.f32 %v1153, %v1154
    %s1156 = vtos %v1155
    %s1157 = smul.f32 %s1140, 0.0025510204
    %s1158 = smul.f32 %s1156, 0.0025510204
    %s1159 = smul.f32 %s1157, %s1157
    %s1160 = ssub.f32 %s1158, %s1159
    %s1161 = sadd.f32 %s1160, 1e-05
    %v1162 = vstv %s1161
    %v1163 = vrsqrt.pop %v1162
    %s1164 = vtos %v1163
    %s1165 = sld [smem:[#allocation6]]
    %s1166 = smul.f32 %s1164, %s1165
    %s1167 = sld [smem:[#allocation8]]
    %s1168 = smul.f32 %s1157, %s1166
    %s1169 = ssub.f32 %s1167, %s1168
    %v1170 = vstv %s1166
    %v1171 = vmul.f32 %v909, %v1170
    %v1172 = vmul.f32 %v910, %v1170
    %v1173 = vmul.f32 %v911, %v1170
    %v1174 = vmul.f32 %v912, %v1170
    %v1175 = vstv %s1169
    %v1176 = vadd.f32 %v1171, %v1175
    %v1177 = vadd.f32 %v1172, %v1175
    %v1178 = vadd.f32 %v1173, %v1175
    %v1179 = vadd.f32 %v1174, %v1175
    %v1180 = vmax.f32 %v1176, 0.0
    %v1181 = vmax.f32 %v1177, 0.0
    %v1182 = vmax.f32 %v1178, 0.0
    %v1183 = vmax.f32 %v1179, 0.0
    %v1184 = vsel %vm1123, %v1041, 0.0
    %v1185 = vsel %vm1125, %v1044, 0.0
    %v1186 = vadd.f32 %v1184, %v1185
    %v1187 = vsel %vm1123, %v1047, 0.0
    %v1188 = vadd.f32 %v1186, %v1187
    %v1189 = vsel %vm1125, %v1050, 0.0
    %v1190 = vadd.f32 %v1188, %v1189
    %1191 = vadd.xlane.f32.xlu0 %v1190
    %v1192 = vpop.xlane.xlu0 %1191
    %v1193 = vrot.slane %v1192, 4
    %v1194 = vadd.f32 %v1192, %v1193
    %v1195 = vrot.slane %v1194, 2
    %v1196 = vadd.f32 %v1194, %v1195
    %v1197 = vrot.slane %v1196, 1
    %v1198 = vadd.f32 %v1196, %v1197
    %s1199 = vtos %v1198
    %v1200 = vsel %vm1123, %v1089, 0.0
    %v1201 = vsel %vm1125, %v1092, 0.0
    %v1202 = vadd.f32 %v1200, %v1201
    %v1203 = vsel %vm1123, %v1095, 0.0
    %v1204 = vadd.f32 %v1202, %v1203
    %v1205 = vsel %vm1125, %v1098, 0.0
    %v1206 = vadd.f32 %v1204, %v1205
    %1207 = vadd.xlane.f32.xlu0 %v1206
    %v1208 = vpop.xlane.xlu0 %1207
    %v1209 = vrot.slane %v1208, 4
    %v1210 = vadd.f32 %v1208, %v1209
    %v1211 = vrot.slane %v1210, 2
    %v1212 = vadd.f32 %v1210, %v1211
    %v1213 = vrot.slane %v1212, 1
    %v1214 = vadd.f32 %v1212, %v1213
    %s1215 = vtos %v1214
    %s1216 = smul.f32 %s1199, 0.0025510204
    %s1217 = smul.f32 %s1215, 0.0025510204
    %s1218 = smul.f32 %s1216, %s1216
    %s1219 = ssub.f32 %s1217, %s1218
    %s1220 = sadd.f32 %s1219, 1e-05
    %v1221 = vstv %s1220
    %v1222 = vrsqrt.pop %v1221
    %s1223 = vtos %v1222
    %s1224 = sld [smem:[#allocation6 + $0x1]]
    %s1225 = smul.f32 %s1223, %s1224
    %s1226 = sld [smem:[#allocation8 + $0x1]]
    %s1227 = smul.f32 %s1216, %s1225
    %s1228 = ssub.f32 %s1226, %s1227
    %v1229 = vstv %s1225
    %v1230 = vmul.f32 %v941, %v1229
    %v1231 = vmul.f32 %v942, %v1229
    %v1232 = vmul.f32 %v943, %v1229
    %v1233 = vmul.f32 %v944, %v1229
    %v1234 = vstv %s1228
    %v1235 = vadd.f32 %v1230, %v1234
    %v1236 = vadd.f32 %v1231, %v1234
    %v1237 = vadd.f32 %v1232, %v1234
    %v1238 = vadd.f32 %v1233, %v1234
    %v1239 = vmax.f32 %v1235, 0.0
    %v1240 = vmax.f32 %v1236, 0.0
    %v1241 = vmax.f32 %v1237, 0.0
    %v1242 = vmax.f32 %v1238, 0.0
    %v1243 = vadd.f32 %v1180, %v1239
    %v1244 = vadd.f32 %v1181, %v1240
    %v1245 = vadd.f32 %v1182, %v1241
    %v1246 = vadd.f32 %v1183, %v1242
    %v1247 = vsel %vm1123, %v1053, 0.0
    %v1248 = vsel %vm1125, %v1056, 0.0
    %v1249 = vadd.f32 %v1247, %v1248
    %v1250 = vsel %vm1123, %v1059, 0.0
    %v1251 = vadd.f32 %v1249, %v1250
    %v1252 = vsel %vm1125, %v1062, 0.0
    %v1253 = vadd.f32 %v1251, %v1252
    %1254 = vadd.xlane.f32.xlu0 %v1253
    %v1255 = vpop.xlane.xlu0 %1254
    %v1256 = vrot.slane %v1255, 4
    %v1257 = vadd.f32 %v1255, %v1256
    %v1258 = vrot.slane %v1257, 2
    %v1259 = vadd.f32 %v1257, %v1258
    %v1260 = vrot.slane %v1259, 1
    %v1261 = vadd.f32 %v1259, %v1260
    %s1262 = vtos %v1261
    %v1263 = vsel %vm1123, %v1101, 0.0
    %v1264 = vsel %vm1125, %v1104, 0.0
    %v1265 = vadd.f32 %v1263, %v1264
    %v1266 = vsel %vm1123, %v1107, 0.0
    %v1267 = vadd.f32 %v1265, %v1266
    %v1268 = vsel %vm1125, %v1110, 0.0
    %v1269 = vadd.f32 %v1267, %v1268
    %1270 = vadd.xlane.f32.xlu0 %v1269
    %v1271 = vpop.xlane.xlu0 %1270
    %v1272 = vrot.slane %v1271, 4
    %v1273 = vadd.f32 %v1271, %v1272
    %v1274 = vrot.slane %v1273, 2
    %v1275 = vadd.f32 %v1273, %v1274
    %v1276 = vrot.slane %v1275, 1
    %v1277 = vadd.f32 %v1275, %v1276
    %s1278 = vtos %v1277
    %s1279 = smul.f32 %s1262, 0.0025510204
    %s1280 = smul.f32 %s1278, 0.0025510204
    %s1281 = smul.f32 %s1279, %s1279
    %s1282 = ssub.f32 %s1280, %s1281
    %s1283 = sadd.f32 %s1282, 1e-05
    %v1284 = vstv %s1283
    %v1285 = vrsqrt.pop %v1284
    %s1286 = vtos %v1285
    %s1287 = sld [smem:[#allocation6 + $0x2]]
    %s1288 = smul.f32 %s1286, %s1287
    %s1289 = sld [smem:[#allocation8 + $0x2]]
    %s1290 = smul.f32 %s1279, %s1288
    %s1291 = ssub.f32 %s1289, %s1290
    %v1292 = vstv %s1288
    %v1293 = vmul.f32 %v973, %v1292
    %v1294 = vmul.f32 %v974, %v1292
    %v1295 = vmul.f32 %v975, %v1292
    %v1296 = vmul.f32 %v976, %v1292
    %v1297 = vstv %s1291
    %v1298 = vadd.f32 %v1293, %v1297
    %v1299 = vadd.f32 %v1294, %v1297
    %v1300 = vadd.f32 %v1295, %v1297
    %v1301 = vadd.f32 %v1296, %v1297
    %v1302 = vmax.f32 %v1298, 0.0
    %v1303 = vmax.f32 %v1299, 0.0
    %v1304 = vmax.f32 %v1300, 0.0
    %v1305 = vmax.f32 %v1301, 0.0
    %v1306 = vadd.f32 %v1243, %v1302
    %v1307 = vadd.f32 %v1244, %v1303
    %v1308 = vadd.f32 %v1245, %v1304
    %v1309 = vadd.f32 %v1246, %v1305
    %v1310 = vsel %vm1123, %v1065, 0.0
    %v1311 = vsel %vm1125, %v1068, 0.0
    %v1312 = vadd.f32 %v1310, %v1311
    %v1313 = vsel %vm1123, %v1071, 0.0
    %v1314 = vadd.f32 %v1312, %v1313
    %v1315 = vsel %vm1125, %v1074, 0.0
    %v1316 = vadd.f32 %v1314, %v1315
    %1317 = vadd.xlane.f32.xlu0 %v1316
    %v1318 = vpop.xlane.xlu0 %1317
    %v1319 = vrot.slane %v1318, 4
    %v1320 = vadd.f32 %v1318, %v1319
    %v1321 = vrot.slane %v1320, 2
    %v1322 = vadd.f32 %v1320, %v1321
    %v1323 = vrot.slane %v1322, 1
    %v1324 = vadd.f32 %v1322, %v1323
    %s1325 = vtos %v1324
    %v1326 = vsel %vm1123, %v1113, 0.0
    %v1327 = vsel %vm1125, %v1116, 0.0
    %v1328 = vadd.f32 %v1326, %v1327
    %v1329 = vsel %vm1123, %v1119, 0.0
    %v1330 = vadd.f32 %v1328, %v1329
    %v1331 = vsel %vm1125, %v1122, 0.0
    %v1332 = vadd.f32 %v1330, %v1331
    %1333 = vadd.xlane.f32.xlu0 %v1332
    %v1334 = vpop.xlane.xlu0 %1333
    %v1335 = vrot.slane %v1334, 4
    %v1336 = vadd.f32 %v1334, %v1335
    %v1337 = vrot.slane %v1336, 2
    %v1338 = vadd.f32 %v1336, %v1337
    %v1339 = vrot.slane %v1338, 1
    %v1340 = vadd.f32 %v1338, %v1339
    %s1341 = vtos %v1340
    %s1342 = smul.f32 %s1325, 0.0025510204
    %s1343 = smul.f32 %s1341, 0.0025510204
    %s1344 = smul.f32 %s1342, %s1342
    %s1345 = ssub.f32 %s1343, %s1344
    %s1346 = sadd.f32 %s1345, 1e-05
    %v1347 = vstv %s1346
    %v1348 = vrsqrt.pop %v1347
    %s1349 = vtos %v1348
    %s1350 = sld [smem:[#allocation6 + $0x3]]
    %s1351 = smul.f32 %s1349, %s1350
    %s1352 = sld [smem:[#allocation8 + $0x3]]
    %s1353 = smul.f32 %s1342, %s1351
    %s1354 = ssub.f32 %s1352, %s1353
    %v1355 = vstv %s1351
    %v1356 = vmul.f32 %v1005, %v1355
    %v1357 = vmul.f32 %v1006, %v1355
    %v1358 = vmul.f32 %v1007, %v1355
    %v1359 = vmul.f32 %v1008, %v1355
    %v1360 = vstv %s1354
    %v1361 = vadd.f32 %v1356, %v1360
    %v1362 = vadd.f32 %v1357, %v1360
    %v1363 = vadd.f32 %v1358, %v1360
    %v1364 = vadd.f32 %v1359, %v1360
    %v1365 = vmax.f32 %v1361, 0.0
    %v1366 = vmax.f32 %v1362, 0.0
    %v1367 = vmax.f32 %v1363, 0.0
    %v1368 = vmax.f32 %v1364, 0.0
    %v1369 = vadd.f32 %v1306, %v1365
    %v1370 = vadd.f32 %v1307, %v1366
    %v1371 = vadd.f32 %v1308, %v1367
    %v1372 = vadd.f32 %v1309, %v1368
    %v1373 = vsel %vm1025, %v1369, 0.0
    %v1374 = vsel %vm1029, %v1370, 0.0
    %v1375 = vadd.f32 %v1373, %v1374
    %v1376 = vsel %vm1025, %v1371, 0.0
    %v1377 = vadd.f32 %v1375, %v1376
    %v1378 = vsel %vm1029, %v1372, 0.0
    %v1379 = vadd.f32 %v1377, %v1378
    %1380 = vadd.xlane.f32.xlu0 %v1379
    %v1381 = vpop.xlane.xlu0 %1380
    %v1382 = vrot.slane %v1381, 4
    %v1383 = vadd.f32 %v1381, %v1382
    %v1384 = vrot.slane %v1383, 2
    %v1385 = vadd.f32 %v1383, %v1384
    %v1386 = vrot.slane %v1385, 1
    %v1387 = vadd.f32 %v1385, %v1386
    %s1388 = vtos %v1387
    %v1389 = vstv %s1388
    %v1390 = vadd.f32 %v1389, 0.0
    %1391 = vst [vmem:[%s4] sm:$0xff] %v1390
    // Predicated region
    $region34: #{model_forward.1} parent=1 // pred_check
      _
    $region35: #{model_forward.1} parent=1 // pred_check_branch
      %1393 = sbr.rel (0) target = $region37
    $region36: #{model_forward.1} parent=1 // pred_region
      _
    $region37: #{model_forward.1} parent=1 // pred_fallthru
      _
    // Predicated region
    $region38: #{model_forward.1} parent=1 // pred_check
      _
    $region39: #{model_forward.1} parent=1 // pred_check_branch
      %1395 = sbr.rel (0) target = $region41
    $region40: #{model_forward.1} parent=1 // pred_region
      _
    $region41: #{model_forward.1} parent=1 // pred_fallthru
      _
    %1396 = vsyncpa [#allocation3], 1
    %1397 = vsyncpa [#allocation4], 1
    %1398 = vsyncpa [#allocation7], 1

</llo_original>
